<compile_context>
chip_gen: v5e
topology: v5e:2x2
jax: 0.10.0
libtpu: 0.0.40
codegen_flags: <defaults>
</compile_context>

<pallas_src>
import jax
import jax.numpy as jnp
from jax.experimental import pallas as pl
from jax.experimental.pallas import tpu as pltpu

C_IN = 7       # 6 state channels + 1 action channel (fixed by the module)
H = 15         # height (fixed by conv_s kernel (15,1))
W = 4          # width  (fixed by stride-4 convs + fc1 in-features = out_ch*(15+1))
N_CONV = 4     # conv1..conv4
GO = 128       # lane-padded per-conv output group
KC_PAD = 32    # conv-branch contraction dim, padded 28 -> 32
KS_PAD = 112   # conv_s contraction dim,      padded 105 -> 112
BP_ALIGN = 16  # batch padded to a bf16-tile multiple
BN_EPS = 1e-5


# ------------------------------ Pallas kernel ------------------------------ #

def deepnet_kernel(x_cw_ref, x_s_ref, wc_ref, ws_ref, w1_ref, slab_ref, out_ref):
    """Fully fused DeepNet forward (eval mode).

    x_cw_ref : (H*Bp, 32)       bf16, row = h*Bp + b, col = c*4 + w (zero K pad)
    x_s_ref  : (W*Bp, 112)      bf16, row = w*Bp + b, col = c*15 + h (zero K pad)
    wc_ref   : (32, 4*128)      bf16, conv_k weights in lane group k (lanes 64..127 zero)
    ws_ref   : (112, 128)       bf16, conv_s weights (lanes 64..127 zero)
    w1_ref   : (16, 128, 64)    bf16, fc1 blocks: 15 per-height blocks + conv_s block
    slab_ref : (8, 512)         f32 epilogue slab:
                 row0 scalec, row1 shiftc (=scale*conv_b+bn_shift), row2 scales,
                 row3 shifts, row4 fc1 bias, row5 fc2 row, row6[0] fc2 bias
    out_ref  : (Bp, 1)          f32
    """
    Bp = out_ref.shape[0]
    O = w1_ref.shape[-1]

    # conv1..conv4: all four convs in one MXU matmul, BN scale/shift as f32 epilogue.
    yc = jnp.dot(x_cw_ref[...], wc_ref[...], preferred_element_type=jnp.float32)
    yc = yc * slab_ref[0:1, :] + slab_ref[1:2, :]                    # (H*Bp, 512)
    # width-concat + MaxPool((1,4)) == max over the 4 lane-tile-aligned conv groups.
    p1 = jnp.maximum(jnp.maximum(yc[:, 0:GO], yc[:, GO:2 * GO]),
                     jnp.maximum(yc[:, 2 * GO:3 * GO], yc[:, 3 * GO:4 * GO]))

    # conv_s branch (4 width positions stacked on rows), BN epilogue, row-group max.
    ys = jnp.dot(x_s_ref[...], ws_ref[...], preferred_element_type=jnp.float32)
    ys = ys * slab_ref[2:3, 0:GO] + slab_ref[3:4, 0:GO]              # (W*Bp, 128)
    p2 = jnp.maximum(jnp.maximum(ys[0:Bp], ys[Bp:2 * Bp]),
                     jnp.maximum(ys[2 * Bp:3 * Bp], ys[3 * Bp:4 * Bp]))   # (Bp, 128)

    # Dropout is identity in eval mode.
    # fc1: hidden[b,:] = sum_h p1[(h,b),:] @ W1_h + p2[b,:] @ W1_s + b1
    p1b = p1.astype(jnp.bfloat16)        # single hoisted pack (H*Bp, 128)
    p2b = p2.astype(jnp.bfloat16)        # (Bp, 128)
    parts = [jnp.dot(p1b[h * Bp:(h + 1) * Bp, :], w1_ref[h],
                     preferred_element_type=jnp.float32) for h in range(H)]
    parts.append(jnp.dot(p2b, w1_ref[H], preferred_element_type=jnp.float32))
    while len(parts) > 1:                # balanced add tree (short dependence chain)
        nxt = [parts[i] + parts[i + 1] for i in range(0, len(parts) - 1, 2)]
        if len(parts) % 2:
            nxt.append(parts[-1])
        parts = nxt
    h1 = jnp.maximum(parts[0] + slab_ref[4:5, 0:O], 0.0)             # (Bp, O)

    # fc2: avoid a degenerate N=1 MXU matmul -> VPU multiply + lane reduction.
    out_ref[...] = (jnp.sum(h1 * slab_ref[5:6, 0:O], axis=-1, keepdims=True)
                    + slab_ref[6:7, 0:1])


# --------------------------- parameter preparation -------------------------- #

def prepare_params(params, out_ch):
    """One-time repacking of PyTorch-layout parameters (hoisted off the hot path)."""
    O = out_ch
    scale = params['bn_gamma'] / jnp.sqrt(params['bn_var'] + BN_EPS)
    shift = params['bn_beta'] - params['bn_mean'] * scale

    # conv1..4 weights (un-scaled; BN scale applied in-kernel in f32), lane-group padded.
    wc = jnp.zeros((KC_PAD, N_CONV * GO), jnp.float32)
    scalec = jnp.zeros((N_CONV * GO,), jnp.float32)
    shiftc = jnp.zeros((N_CONV * GO,), jnp.float32)
    for k in range(1, N_CONV + 1):
        wk = jnp.transpose(params[f'conv{k}_w'][:, :, 0, :], (1, 2, 0))     # (C, k, O)
        wk = jnp.pad(wk, ((0, 0), (0, W - k), (0, 0))).reshape(C_IN * W, O)
        col = (k - 1) * GO
        wc = wc.at[:C_IN * W, col:col + O].set(wk)
        scalec = scalec.at[col:col + O].set(scale)
        shiftc = shiftc.at[col:col + O].set(scale * params[f'conv{k}_b'] + shift)
    wc = wc.astype(jnp.bfloat16)                                            # (32, 512)

    ws = jnp.zeros((KS_PAD, GO), jnp.float32)
    ws = ws.at[:C_IN * H, :O].set(
        jnp.transpose(params['conv_s_w'][:, :, :, 0], (1, 2, 0)).reshape(C_IN * H, O))
    ws = ws.astype(jnp.bfloat16)                                            # (112, 128)
    scales = jnp.zeros((GO,), jnp.float32).at[:O].set(scale)
    shifts = jnp.zeros((GO,), jnp.float32).at[:O].set(scale * params['conv_s_b'] + shift)

    # fc1 rows regrouped per pooled-height block (+ conv_s block), K zero-padded O -> 128.
    w1 = jnp.zeros((H + 1, GO, O), jnp.float32)
    w1c = jnp.transpose(params['fc1_w'][:, :O * H].reshape(O, O, H), (2, 1, 0))  # (H,O,O)
    w1 = w1.at[:H, :O, :].set(w1c)
    w1 = w1.at[H, :O, :].set(params['fc1_w'][:, O * H:].T)
    w1 = w1.astype(jnp.bfloat16)                                            # (16, 128, 64)

    # Single f32 epilogue slab (one operand instead of 7 tiny row vectors).
    slab = jnp.zeros((8, N_CONV * GO), jnp.float32)
    slab = slab.at[0].set(scalec)
    slab = slab.at[1].set(shiftc)
    slab = slab.at[2, :GO].set(scales)
    slab = slab.at[3, :GO].set(shifts)
    slab = slab.at[4, :O].set(params['fc1_b'])
    slab = slab.at[5, :O].set(params['fc2_w'][0])
    slab = slab.at[6, 0].set(params['fc2_b'][0])
    return dict(wc=wc, ws=ws, w1=w1, slab=slab)


# ------------------------------ forward wrapper ----------------------------- #

def deepnet_forward(state, actions, prep):
    B = actions.shape[0]
    O = prep['w1'].shape[-1]
    Bp = max(BP_ALIGN, ((B + BP_ALIGN - 1) // BP_ALIGN) * BP_ALIGN)  # bucketed batch pad

    if state.ndim == 3:                          # state.unsqueeze(0).repeat(...)
        state = jnp.broadcast_to(state[None], (B,) + state.shape)
    sa = jnp.concatenate([state.astype(jnp.float32),
                          actions[:, None].astype(jnp.float32)], axis=1)   # (B,7,15,4)
    if Bp != B:
        sa = jnp.pad(sa, ((0, Bp - B), (0, 0), (0, 0), (0, 0)))

    # Activation repacking (bf16 MXU operands), K zero-padded to tile-aligned widths.
    x_cw = jnp.transpose(sa, (2, 0, 1, 3)).reshape(H * Bp, C_IN * W)
    x_cw = jnp.pad(x_cw, ((0, 0), (0, KC_PAD - C_IN * W))).astype(jnp.bfloat16)
    x_s = jnp.transpose(sa, (3, 0, 1, 2)).reshape(W * Bp, C_IN * H)
    x_s = jnp.pad(x_s, ((0, 0), (0, KS_PAD - C_IN * H))).astype(jnp.bfloat16)

    operands = (x_cw, x_s, prep['wc'], prep['ws'], prep['w1'], prep['slab'])

    flops = 2 * (H * Bp * KC_PAD * (N_CONV * GO)     # fused conv matmul
                 + W * Bp * KS_PAD * GO              # conv_s matmul
                 + (H + 1) * Bp * GO * O             # fc1 block matmuls
                 + Bp * O)                           # fc2 mul + reduce
    bytes_accessed = sum(int(a.size) * a.dtype.itemsize for a in operands) + Bp * 4

    out = pl.pallas_call(
        deepnet_kernel,
        out_shape=jax.ShapeDtypeStruct((Bp, 1), jnp.float32),
        cost_estimate=pl.CostEstimate(flops=flops, transcendentals=0,
                                      bytes_accessed=bytes_accessed),
    )(*operands)
    return out[:B]


# -------------------------- references (pure JAX) ---------------------------- #

def reference_forward(state, actions, params, out_ch):
    """f32 re-implementation of the PyTorch forward (eval mode)."""
    B = actions.shape[0]
    if state.ndim == 3:
        state = jnp.broadcast_to(state[None], (B,) + state.shape)
    sa = jnp.concatenate([state, actions[:, None]], axis=1).astype(jnp.float32)
    scale = params['bn_gamma'] / jnp.sqrt(params['bn_var'] + BN_EPS)
    shift = params['bn_beta'] - params['bn_mean'] * scale
    res = []
    for k in range(1, 5):
        wk = params[f'conv{k}_w'][:, :, 0, :]                        # (O,7,k)
        y = jnp.einsum('bchw,ocw->boh', sa[:, :, :, :k], wk) + params[f'conv{k}_b'][None, :, None]
        res.append(y[..., None])
    x = jnp.concatenate(res, axis=-1)                                # (B,O,15,4)
    x = x * scale[None, :, None, None] + shift[None, :, None, None]
    x = x.max(axis=-1).reshape(B, -1)                                # (B, O*15)
    ys = (jnp.einsum('bchw,och->bow', sa, params['conv_s_w'][:, :, :, 0])
          + params['conv_s_b'][None, :, None])
    ys = ys * scale[None, :, None] + shift[None, :, None]
    ys = ys.max(axis=-1)                                             # (B, O)
    feat = jnp.concatenate([x, ys], axis=-1)
    h1 = jnp.maximum(feat @ params['fc1_w'].T + params['fc1_b'], 0.0)
    return h1 @ params['fc2_w'].T + params['fc2_b']


def folded_reference(x_cw, x_s, prep, B):
    """Same folded/bf16 math as the kernel, in plain JAX -> tight correctness check."""
    f32 = jnp.float32
    Bp = x_s.shape[0] // W
    slab = prep['slab']
    yc = x_cw.astype(f32) @ prep['wc'].astype(f32) * slab[0:1, :] + slab[1:2, :]
    p1 = jnp.max(yc.reshape(H * Bp, N_CONV, GO), axis=1)             # (H*Bp, 128)
    ys = x_s.astype(f32) @ prep['ws'].astype(f32) * slab[2:3, :GO] + slab[3:4, :GO]
    p2 = jnp.max(ys.reshape(W, Bp, GO), axis=0)                      # (Bp, 128)
    feats = jnp.concatenate([p1.reshape(H, Bp, GO), p2[None]], axis=0)
    feats = feats.astype(jnp.bfloat16).astype(f32)                   # same rounding as kernel
    h1 = jnp.einsum('hbk,hko->bo', feats, prep['w1'].astype(f32))
    h1 = jnp.maximum(h1 + slab[4:5, :prep['w1'].shape[-1]], 0.0)
    out = h1 @ slab[5, :prep['w1'].shape[-1]][:, None] + slab[6, 0]
    return out[:B]


# ------------------------------- param init -------------------------------- #

def init_params(key, out_ch):
    ks = jax.random.split(key, 20)

    def u(k, shape, fan_in):
        b = 1.0 / jnp.sqrt(jnp.float32(fan_in))
        return jax.random.uniform(k, shape, jnp.float32, -b, b)

    p, i = {}, 0
    for k in range(1, 5):
        p[f'conv{k}_w'] = u(ks[i], (out_ch, C_IN, 1, k), C_IN * k); i += 1
        p[f'conv{k}_b'] = u(ks[i], (out_ch,), C_IN * k); i += 1
    p['conv_s_w'] = u(ks[i], (out_ch, C_IN, H, 1), C_IN * H); i += 1
    p['conv_s_b'] = u(ks[i], (out_ch,), C_IN * H); i += 1
    p['bn_gamma'] = 0.5 + jax.random.uniform(ks[i], (out_ch,), jnp.float32); i += 1
    p['bn_beta'] = 0.1 * jax.random.normal(ks[i], (out_ch,), jnp.float32); i += 1
    p['bn_mean'] = 0.1 * jax.random.normal(ks[i], (out_ch,), jnp.float32); i += 1
    p['bn_var'] = 0.5 + jax.random.uniform(ks[i], (out_ch,), jnp.float32); i += 1
    fc1_in = out_ch * (H + 1)
    p['fc1_w'] = u(ks[i], (out_ch, fc1_in), fc1_in); i += 1
    p['fc1_b'] = u(ks[i], (out_ch,), fc1_in); i += 1
    p['fc2_w'] = u(ks[i], (1, out_ch), out_ch); i += 1
    p['fc2_b'] = u(ks[i], (1,), out_ch); i += 1
    return p


if __name__ == "__main__":
    out_ch = 64
    B = 4
    key = jax.random.PRNGKey(0)
    kp, ks_, ka = jax.random.split(key, 3)
    params = init_params(kp, out_ch)
    prep = prepare_params(params, out_ch)        # repacking hoisted off the hot path

    state = jax.random.normal(ks_, (6, H, W), jnp.float32)     # 3-D state -> repeat path
    actions = jax.random.normal(ka, (B, H, W), jnp.float32)    # (B, 15, 4)

    fwd = jax.jit(deepnet_forward)
    out = jax.block_until_ready(fwd(state, actions, prep))
    assert out.shape == (B, 1)

    # Loose check vs the pure-f32 PyTorch-semantics reference (bf16 MXU operands).
    ref = reference_forward(state, actions, params, out_ch)
    if not bool(jnp.allclose(out, ref, rtol=5e-2, atol=5e-2)):
        raise SystemExit(
            f"mismatch vs f32 reference: max abs diff {float(jnp.max(jnp.abs(out - ref)))}")

    # Tight check vs the same folded/bf16 math done in plain JAX (catches layout bugs).
    Bp = max(BP_ALIGN, ((B + BP_ALIGN - 1) // BP_ALIGN) * BP_ALIGN)
    sa = jnp.concatenate([jnp.broadcast_to(state[None], (B, 6, H, W)),
                          actions[:, None]], axis=1).astype(jnp.float32)
    sa = jnp.pad(sa, ((0, Bp - B), (0, 0), (0, 0), (0, 0)))
    x_cw = jnp.pad(jnp.transpose(sa, (2, 0, 1, 3)).reshape(H * Bp, C_IN * W),
                   ((0, 0), (0, KC_PAD - C_IN * W))).astype(jnp.bfloat16)
    x_s = jnp.pad(jnp.transpose(sa, (3, 0, 1, 2)).reshape(W * Bp, C_IN * H),
                  ((0, 0), (0, KS_PAD - C_IN * H))).astype(jnp.bfloat16)
    ref_folded = folded_reference(x_cw, x_s, prep, B)
    if not bool(jnp.allclose(out, ref_folded, rtol=5e-3, atol=5e-3)):
        raise SystemExit(
            f"mismatch vs folded reference: max abs diff "
            f"{float(jnp.max(jnp.abs(out - ref_folded)))}")

    print("KERNEL_OK")
</pallas_src>

<mosaic_0001>
module attributes {stable_mosaic.version = 11 : i64} {
  func.func @deepnet_kernel(%arg0: memref<240x32xbf16, #tpu.memory_space<vmem>>, %arg1: memref<64x112xbf16, #tpu.memory_space<vmem>>, %arg2: memref<32x512xbf16, #tpu.memory_space<vmem>>, %arg3: memref<112x128xbf16, #tpu.memory_space<vmem>>, %arg4: memref<16x128x64xbf16, #tpu.memory_space<vmem>>, %arg5: memref<8x512xf32, #tpu.memory_space<vmem>>, %arg6: memref<16x1xf32, #tpu.memory_space<vmem>>) attributes {dimension_semantics = [], scalar_prefetch = 0 : i64, scratch_operands = 0 : i64, tpu.core_type = #tpu.core_type<tc>} {
    %c0 = arith.constant 0 : index
    %c0_0 = arith.constant 0 : index
    %0 = vector.load %arg0[%c0, %c0_0] : memref<240x32xbf16, #tpu.memory_space<vmem>>, vector<240x32xbf16>
    %c0_1 = arith.constant 0 : index
    %c0_2 = arith.constant 0 : index
    %1 = vector.load %arg2[%c0_1, %c0_2] : memref<32x512xbf16, #tpu.memory_space<vmem>>, vector<32x512xbf16>
    %cst = arith.constant dense<0.000000e+00> : vector<240x512xf32>
    %2 = tpu.matmul %0, %1, %cst {dimension_numbers = #tpu.dot_dimension_numbers<[1], [0], [0], [1], [0, 0, 1, 1], [], []>} : vector<240x32xbf16>, vector<32x512xbf16>, vector<240x512xf32> -> vector<240x512xf32>
    %c0_3 = arith.constant 0 : index
    %c0_4 = arith.constant 0 : index
    %3 = vector.load %arg5[%c0_3, %c0_4] : memref<8x512xf32, #tpu.memory_space<vmem>>, vector<1x512xf32>
    %4 = vector.broadcast %3 : vector<1x512xf32> to vector<240x512xf32>
    %5 = arith.mulf %2, %4 : vector<240x512xf32>
    %c1 = arith.constant 1 : index
    %c0_5 = arith.constant 0 : index
    %6 = vector.load %arg5[%c1, %c0_5] : memref<8x512xf32, #tpu.memory_space<vmem>>, vector<1x512xf32>
    %7 = vector.broadcast %6 : vector<1x512xf32> to vector<240x512xf32>
    %8 = arith.addf %5, %7 : vector<240x512xf32>
    %9 = vector.extract_strided_slice %8 {offsets = [0, 0], sizes = [240, 128], strides = [1, 1]} : vector<240x512xf32> to vector<240x128xf32>
    %10 = vector.extract_strided_slice %8 {offsets = [0, 128], sizes = [240, 128], strides = [1, 1]} : vector<240x512xf32> to vector<240x128xf32>
    %11 = arith.maximumf %9, %10 : vector<240x128xf32>
    %12 = vector.extract_strided_slice %8 {offsets = [0, 256], sizes = [240, 128], strides = [1, 1]} : vector<240x512xf32> to vector<240x128xf32>
    %13 = vector.extract_strided_slice %8 {offsets = [0, 384], sizes = [240, 128], strides = [1, 1]} : vector<240x512xf32> to vector<240x128xf32>
    %14 = arith.maximumf %12, %13 : vector<240x128xf32>
    %15 = arith.maximumf %11, %14 : vector<240x128xf32>
    %c0_6 = arith.constant 0 : index
    %c0_7 = arith.constant 0 : index
    %16 = vector.load %arg1[%c0_6, %c0_7] : memref<64x112xbf16, #tpu.memory_space<vmem>>, vector<64x112xbf16>
    %c0_8 = arith.constant 0 : index
    %c0_9 = arith.constant 0 : index
    %17 = vector.load %arg3[%c0_8, %c0_9] : memref<112x128xbf16, #tpu.memory_space<vmem>>, vector<112x128xbf16>
    %cst_10 = arith.constant dense<0.000000e+00> : vector<64x128xf32>
    %18 = tpu.matmul %16, %17, %cst_10 {dimension_numbers = #tpu.dot_dimension_numbers<[1], [0], [0], [1], [0, 0, 1, 1], [], []>} : vector<64x112xbf16>, vector<112x128xbf16>, vector<64x128xf32> -> vector<64x128xf32>
    %c2 = arith.constant 2 : index
    %c0_11 = arith.constant 0 : index
    %19 = vector.load %arg5[%c2, %c0_11] : memref<8x512xf32, #tpu.memory_space<vmem>>, vector<1x128xf32>
    %20 = vector.broadcast %19 : vector<1x128xf32> to vector<64x128xf32>
    %21 = arith.mulf %18, %20 : vector<64x128xf32>
    %c3 = arith.constant 3 : index
    %c0_12 = arith.constant 0 : index
    %22 = vector.load %arg5[%c3, %c0_12] : memref<8x512xf32, #tpu.memory_space<vmem>>, vector<1x128xf32>
    %23 = vector.broadcast %22 : vector<1x128xf32> to vector<64x128xf32>
    %24 = arith.addf %21, %23 : vector<64x128xf32>
    %25 = vector.extract_strided_slice %24 {offsets = [0, 0], sizes = [16, 128], strides = [1, 1]} : vector<64x128xf32> to vector<16x128xf32>
    %26 = vector.extract_strided_slice %24 {offsets = [16, 0], sizes = [16, 128], strides = [1, 1]} : vector<64x128xf32> to vector<16x128xf32>
    %27 = arith.maximumf %25, %26 : vector<16x128xf32>
    %28 = vector.extract_strided_slice %24 {offsets = [32, 0], sizes = [16, 128], strides = [1, 1]} : vector<64x128xf32> to vector<16x128xf32>
    %29 = vector.extract_strided_slice %24 {offsets = [48, 0], sizes = [16, 128], strides = [1, 1]} : vector<64x128xf32> to vector<16x128xf32>
    %30 = arith.maximumf %28, %29 : vector<16x128xf32>
    %31 = arith.maximumf %27, %30 : vector<16x128xf32>
    %32 = arith.truncf %15 : vector<240x128xf32> to vector<240x128xbf16>
    %33 = arith.truncf %31 : vector<16x128xf32> to vector<16x128xbf16>
    %34 = vector.extract_strided_slice %32 {offsets = [0, 0], sizes = [16, 128], strides = [1, 1]} : vector<240x128xbf16> to vector<16x128xbf16>
    %c0_13 = arith.constant 0 : index
    %c0_14 = arith.constant 0 : index
    %c0_15 = arith.constant 0 : index
    %35 = vector.load %arg4[%c0_13, %c0_14, %c0_15] : memref<16x128x64xbf16, #tpu.memory_space<vmem>>, vector<1x128x64xbf16>
    %36 = vector.shape_cast %35 : vector<1x128x64xbf16> to vector<128x64xbf16>
    %cst_16 = arith.constant dense<0.000000e+00> : vector<16x64xf32>
    %37 = tpu.matmul %34, %36, %cst_16 {dimension_numbers = #tpu.dot_dimension_numbers<[1], [0], [0], [1], [0, 0, 1, 1], [], []>} : vector<16x128xbf16>, vector<128x64xbf16>, vector<16x64xf32> -> vector<16x64xf32>
    %38 = vector.extract_strided_slice %32 {offsets = [16, 0], sizes = [16, 128], strides = [1, 1]} : vector<240x128xbf16> to vector<16x128xbf16>
    %c1_17 = arith.constant 1 : index
    %c0_18 = arith.constant 0 : index
    %c0_19 = arith.constant 0 : index
    %39 = vector.load %arg4[%c1_17, %c0_18, %c0_19] : memref<16x128x64xbf16, #tpu.memory_space<vmem>>, vector<1x128x64xbf16>
    %40 = vector.shape_cast %39 : vector<1x128x64xbf16> to vector<128x64xbf16>
    %cst_20 = arith.constant dense<0.000000e+00> : vector<16x64xf32>
    %41 = tpu.matmul %38, %40, %cst_20 {dimension_numbers = #tpu.dot_dimension_numbers<[1], [0], [0], [1], [0, 0, 1, 1], [], []>} : vector<16x128xbf16>, vector<128x64xbf16>, vector<16x64xf32> -> vector<16x64xf32>
    %42 = vector.extract_strided_slice %32 {offsets = [32, 0], sizes = [16, 128], strides = [1, 1]} : vector<240x128xbf16> to vector<16x128xbf16>
    %c2_21 = arith.constant 2 : index
    %c0_22 = arith.constant 0 : index
    %c0_23 = arith.constant 0 : index
    %43 = vector.load %arg4[%c2_21, %c0_22, %c0_23] : memref<16x128x64xbf16, #tpu.memory_space<vmem>>, vector<1x128x64xbf16>
    %44 = vector.shape_cast %43 : vector<1x128x64xbf16> to vector<128x64xbf16>
    %cst_24 = arith.constant dense<0.000000e+00> : vector<16x64xf32>
    %45 = tpu.matmul %42, %44, %cst_24 {dimension_numbers = #tpu.dot_dimension_numbers<[1], [0], [0], [1], [0, 0, 1, 1], [], []>} : vector<16x128xbf16>, vector<128x64xbf16>, vector<16x64xf32> -> vector<16x64xf32>
    %46 = vector.extract_strided_slice %32 {offsets = [48, 0], sizes = [16, 128], strides = [1, 1]} : vector<240x128xbf16> to vector<16x128xbf16>
    %c3_25 = arith.constant 3 : index
    %c0_26 = arith.constant 0 : index
    %c0_27 = arith.constant 0 : index
    %47 = vector.load %arg4[%c3_25, %c0_26, %c0_27] : memref<16x128x64xbf16, #tpu.memory_space<vmem>>, vector<1x128x64xbf16>
    %48 = vector.shape_cast %47 : vector<1x128x64xbf16> to vector<128x64xbf16>
    %cst_28 = arith.constant dense<0.000000e+00> : vector<16x64xf32>
    %49 = tpu.matmul %46, %48, %cst_28 {dimension_numbers = #tpu.dot_dimension_numbers<[1], [0], [0], [1], [0, 0, 1, 1], [], []>} : vector<16x128xbf16>, vector<128x64xbf16>, vector<16x64xf32> -> vector<16x64xf32>
    %50 = vector.extract_strided_slice %32 {offsets = [64, 0], sizes = [16, 128], strides = [1, 1]} : vector<240x128xbf16> to vector<16x128xbf16>
    %c4 = arith.constant 4 : index
    %c0_29 = arith.constant 0 : index
    %c0_30 = arith.constant 0 : index
    %51 = vector.load %arg4[%c4, %c0_29, %c0_30] : memref<16x128x64xbf16, #tpu.memory_space<vmem>>, vector<1x128x64xbf16>
    %52 = vector.shape_cast %51 : vector<1x128x64xbf16> to vector<128x64xbf16>
    %cst_31 = arith.constant dense<0.000000e+00> : vector<16x64xf32>
    %53 = tpu.matmul %50, %52, %cst_31 {dimension_numbers = #tpu.dot_dimension_numbers<[1], [0], [0], [1], [0, 0, 1, 1], [], []>} : vector<16x128xbf16>, vector<128x64xbf16>, vector<16x64xf32> -> vector<16x64xf32>
    %54 = vector.extract_strided_slice %32 {offsets = [80, 0], sizes = [16, 128], strides = [1, 1]} : vector<240x128xbf16> to vector<16x128xbf16>
    %c5 = arith.constant 5 : index
    %c0_32 = arith.constant 0 : index
    %c0_33 = arith.constant 0 : index
    %55 = vector.load %arg4[%c5, %c0_32, %c0_33] : memref<16x128x64xbf16, #tpu.memory_space<vmem>>, vector<1x128x64xbf16>
    %56 = vector.shape_cast %55 : vector<1x128x64xbf16> to vector<128x64xbf16>
    %cst_34 = arith.constant dense<0.000000e+00> : vector<16x64xf32>
    %57 = tpu.matmul %54, %56, %cst_34 {dimension_numbers = #tpu.dot_dimension_numbers<[1], [0], [0], [1], [0, 0, 1, 1], [], []>} : vector<16x128xbf16>, vector<128x64xbf16>, vector<16x64xf32> -> vector<16x64xf32>
    %58 = vector.extract_strided_slice %32 {offsets = [96, 0], sizes = [16, 128], strides = [1, 1]} : vector<240x128xbf16> to vector<16x128xbf16>
    %c6 = arith.constant 6 : index
    %c0_35 = arith.constant 0 : index
    %c0_36 = arith.constant 0 : index
    %59 = vector.load %arg4[%c6, %c0_35, %c0_36] : memref<16x128x64xbf16, #tpu.memory_space<vmem>>, vector<1x128x64xbf16>
    %60 = vector.shape_cast %59 : vector<1x128x64xbf16> to vector<128x64xbf16>
    %cst_37 = arith.constant dense<0.000000e+00> : vector<16x64xf32>
    %61 = tpu.matmul %58, %60, %cst_37 {dimension_numbers = #tpu.dot_dimension_numbers<[1], [0], [0], [1], [0, 0, 1, 1], [], []>} : vector<16x128xbf16>, vector<128x64xbf16>, vector<16x64xf32> -> vector<16x64xf32>
    %62 = vector.extract_strided_slice %32 {offsets = [112, 0], sizes = [16, 128], strides = [1, 1]} : vector<240x128xbf16> to vector<16x128xbf16>
    %c7 = arith.constant 7 : index
    %c0_38 = arith.constant 0 : index
    %c0_39 = arith.constant 0 : index
    %63 = vector.load %arg4[%c7, %c0_38, %c0_39] : memref<16x128x64xbf16, #tpu.memory_space<vmem>>, vector<1x128x64xbf16>
    %64 = vector.shape_cast %63 : vector<1x128x64xbf16> to vector<128x64xbf16>
    %cst_40 = arith.constant dense<0.000000e+00> : vector<16x64xf32>
    %65 = tpu.matmul %62, %64, %cst_40 {dimension_numbers = #tpu.dot_dimension_numbers<[1], [0], [0], [1], [0, 0, 1, 1], [], []>} : vector<16x128xbf16>, vector<128x64xbf16>, vector<16x64xf32> -> vector<16x64xf32>
    %66 = vector.extract_strided_slice %32 {offsets = [128, 0], sizes = [16, 128], strides = [1, 1]} : vector<240x128xbf16> to vector<16x128xbf16>
    %c8 = arith.constant 8 : index
    %c0_41 = arith.constant 0 : index
    %c0_42 = arith.constant 0 : index
    %67 = vector.load %arg4[%c8, %c0_41, %c0_42] : memref<16x128x64xbf16, #tpu.memory_space<vmem>>, vector<1x128x64xbf16>
    %68 = vector.shape_cast %67 : vector<1x128x64xbf16> to vector<128x64xbf16>
    %cst_43 = arith.constant dense<0.000000e+00> : vector<16x64xf32>
    %69 = tpu.matmul %66, %68, %cst_43 {dimension_numbers = #tpu.dot_dimension_numbers<[1], [0], [0], [1], [0, 0, 1, 1], [], []>} : vector<16x128xbf16>, vector<128x64xbf16>, vector<16x64xf32> -> vector<16x64xf32>
    %70 = vector.extract_strided_slice %32 {offsets = [144, 0], sizes = [16, 128], strides = [1, 1]} : vector<240x128xbf16> to vector<16x128xbf16>
    %c9 = arith.constant 9 : index
    %c0_44 = arith.constant 0 : index
    %c0_45 = arith.constant 0 : index
    %71 = vector.load %arg4[%c9, %c0_44, %c0_45] : memref<16x128x64xbf16, #tpu.memory_space<vmem>>, vector<1x128x64xbf16>
    %72 = vector.shape_cast %71 : vector<1x128x64xbf16> to vector<128x64xbf16>
    %cst_46 = arith.constant dense<0.000000e+00> : vector<16x64xf32>
    %73 = tpu.matmul %70, %72, %cst_46 {dimension_numbers = #tpu.dot_dimension_numbers<[1], [0], [0], [1], [0, 0, 1, 1], [], []>} : vector<16x128xbf16>, vector<128x64xbf16>, vector<16x64xf32> -> vector<16x64xf32>
    %74 = vector.extract_strided_slice %32 {offsets = [160, 0], sizes = [16, 128], strides = [1, 1]} : vector<240x128xbf16> to vector<16x128xbf16>
    %c10 = arith.constant 10 : index
    %c0_47 = arith.constant 0 : index
    %c0_48 = arith.constant 0 : index
    %75 = vector.load %arg4[%c10, %c0_47, %c0_48] : memref<16x128x64xbf16, #tpu.memory_space<vmem>>, vector<1x128x64xbf16>
    %76 = vector.shape_cast %75 : vector<1x128x64xbf16> to vector<128x64xbf16>
    %cst_49 = arith.constant dense<0.000000e+00> : vector<16x64xf32>
    %77 = tpu.matmul %74, %76, %cst_49 {dimension_numbers = #tpu.dot_dimension_numbers<[1], [0], [0], [1], [0, 0, 1, 1], [], []>} : vector<16x128xbf16>, vector<128x64xbf16>, vector<16x64xf32> -> vector<16x64xf32>
    %78 = vector.extract_strided_slice %32 {offsets = [176, 0], sizes = [16, 128], strides = [1, 1]} : vector<240x128xbf16> to vector<16x128xbf16>
    %c11 = arith.constant 11 : index
    %c0_50 = arith.constant 0 : index
    %c0_51 = arith.constant 0 : index
    %79 = vector.load %arg4[%c11, %c0_50, %c0_51] : memref<16x128x64xbf16, #tpu.memory_space<vmem>>, vector<1x128x64xbf16>
    %80 = vector.shape_cast %79 : vector<1x128x64xbf16> to vector<128x64xbf16>
    %cst_52 = arith.constant dense<0.000000e+00> : vector<16x64xf32>
    %81 = tpu.matmul %78, %80, %cst_52 {dimension_numbers = #tpu.dot_dimension_numbers<[1], [0], [0], [1], [0, 0, 1, 1], [], []>} : vector<16x128xbf16>, vector<128x64xbf16>, vector<16x64xf32> -> vector<16x64xf32>
    %82 = vector.extract_strided_slice %32 {offsets = [192, 0], sizes = [16, 128], strides = [1, 1]} : vector<240x128xbf16> to vector<16x128xbf16>
    %c12 = arith.constant 12 : index
    %c0_53 = arith.constant 0 : index
    %c0_54 = arith.constant 0 : index
    %83 = vector.load %arg4[%c12, %c0_53, %c0_54] : memref<16x128x64xbf16, #tpu.memory_space<vmem>>, vector<1x128x64xbf16>
    %84 = vector.shape_cast %83 : vector<1x128x64xbf16> to vector<128x64xbf16>
    %cst_55 = arith.constant dense<0.000000e+00> : vector<16x64xf32>
    %85 = tpu.matmul %82, %84, %cst_55 {dimension_numbers = #tpu.dot_dimension_numbers<[1], [0], [0], [1], [0, 0, 1, 1], [], []>} : vector<16x128xbf16>, vector<128x64xbf16>, vector<16x64xf32> -> vector<16x64xf32>
    %86 = vector.extract_strided_slice %32 {offsets = [208, 0], sizes = [16, 128], strides = [1, 1]} : vector<240x128xbf16> to vector<16x128xbf16>
    %c13 = arith.constant 13 : index
    %c0_56 = arith.constant 0 : index
    %c0_57 = arith.constant 0 : index
    %87 = vector.load %arg4[%c13, %c0_56, %c0_57] : memref<16x128x64xbf16, #tpu.memory_space<vmem>>, vector<1x128x64xbf16>
    %88 = vector.shape_cast %87 : vector<1x128x64xbf16> to vector<128x64xbf16>
    %cst_58 = arith.constant dense<0.000000e+00> : vector<16x64xf32>
    %89 = tpu.matmul %86, %88, %cst_58 {dimension_numbers = #tpu.dot_dimension_numbers<[1], [0], [0], [1], [0, 0, 1, 1], [], []>} : vector<16x128xbf16>, vector<128x64xbf16>, vector<16x64xf32> -> vector<16x64xf32>
    %90 = vector.extract_strided_slice %32 {offsets = [224, 0], sizes = [16, 128], strides = [1, 1]} : vector<240x128xbf16> to vector<16x128xbf16>
    %c14 = arith.constant 14 : index
    %c0_59 = arith.constant 0 : index
    %c0_60 = arith.constant 0 : index
    %91 = vector.load %arg4[%c14, %c0_59, %c0_60] : memref<16x128x64xbf16, #tpu.memory_space<vmem>>, vector<1x128x64xbf16>
    %92 = vector.shape_cast %91 : vector<1x128x64xbf16> to vector<128x64xbf16>
    %cst_61 = arith.constant dense<0.000000e+00> : vector<16x64xf32>
    %93 = tpu.matmul %90, %92, %cst_61 {dimension_numbers = #tpu.dot_dimension_numbers<[1], [0], [0], [1], [0, 0, 1, 1], [], []>} : vector<16x128xbf16>, vector<128x64xbf16>, vector<16x64xf32> -> vector<16x64xf32>
    %c15 = arith.constant 15 : index
    %c0_62 = arith.constant 0 : index
    %c0_63 = arith.constant 0 : index
    %94 = vector.load %arg4[%c15, %c0_62, %c0_63] : memref<16x128x64xbf16, #tpu.memory_space<vmem>>, vector<1x128x64xbf16>
    %95 = vector.shape_cast %94 : vector<1x128x64xbf16> to vector<128x64xbf16>
    %cst_64 = arith.constant dense<0.000000e+00> : vector<16x64xf32>
    %96 = tpu.matmul %33, %95, %cst_64 {dimension_numbers = #tpu.dot_dimension_numbers<[1], [0], [0], [1], [0, 0, 1, 1], [], []>} : vector<16x128xbf16>, vector<128x64xbf16>, vector<16x64xf32> -> vector<16x64xf32>
    %97 = arith.addf %37, %41 : vector<16x64xf32>
    %98 = arith.addf %45, %49 : vector<16x64xf32>
    %99 = arith.addf %53, %57 : vector<16x64xf32>
    %100 = arith.addf %61, %65 : vector<16x64xf32>
    %101 = arith.addf %69, %73 : vector<16x64xf32>
    %102 = arith.addf %77, %81 : vector<16x64xf32>
    %103 = arith.addf %85, %89 : vector<16x64xf32>
    %104 = arith.addf %93, %96 : vector<16x64xf32>
    %105 = arith.addf %97, %98 : vector<16x64xf32>
    %106 = arith.addf %99, %100 : vector<16x64xf32>
    %107 = arith.addf %101, %102 : vector<16x64xf32>
    %108 = arith.addf %103, %104 : vector<16x64xf32>
    %109 = arith.addf %105, %106 : vector<16x64xf32>
    %110 = arith.addf %107, %108 : vector<16x64xf32>
    %111 = arith.addf %109, %110 : vector<16x64xf32>
    %c4_65 = arith.constant 4 : index
    %c0_66 = arith.constant 0 : index
    %112 = vector.load %arg5[%c4_65, %c0_66] : memref<8x512xf32, #tpu.memory_space<vmem>>, vector<1x64xf32>
    %113 = vector.broadcast %112 : vector<1x64xf32> to vector<16x64xf32>
    %114 = arith.addf %111, %113 : vector<16x64xf32>
    %cst_67 = arith.constant 0.000000e+00 : f32
    %115 = vector.broadcast %cst_67 : f32 to vector<16x64xf32>
    %116 = arith.maximumf %114, %115 : vector<16x64xf32>
    %c5_68 = arith.constant 5 : index
    %c0_69 = arith.constant 0 : index
    %117 = vector.load %arg5[%c5_68, %c0_69] : memref<8x512xf32, #tpu.memory_space<vmem>>, vector<1x64xf32>
    %118 = vector.broadcast %117 : vector<1x64xf32> to vector<16x64xf32>
    %119 = arith.mulf %116, %118 : vector<16x64xf32>
    %cst_70 = arith.constant dense<0.000000e+00> : vector<16xf32>
    %120 = vector.multi_reduction <add>, %119, %cst_70 [1] : vector<16x64xf32> to vector<16xf32>
    %121 = vector.shape_cast %120 : vector<16xf32> to vector<16x1xf32>
    %c6_71 = arith.constant 6 : index
    %c0_72 = arith.constant 0 : index
    %122 = vector.load %arg5[%c6_71, %c0_72] : memref<8x512xf32, #tpu.memory_space<vmem>>, vector<1x1xf32>
    %123 = vector.broadcast %122 : vector<1x1xf32> to vector<16x1xf32>
    %124 = arith.addf %121, %123 : vector<16x1xf32>
    %c0_73 = arith.constant 0 : index
    %c0_74 = arith.constant 0 : index
    %125 = vector.load %arg6[%c0_73, %c0_74] : memref<16x1xf32, #tpu.memory_space<vmem>>, vector<16x1xf32>
    tpu.vector_store %arg6[%c0_73, %c0_74], %124 {strides = array<i32>} : memref<16x1xf32, #tpu.memory_space<vmem>>, vector<16x1xf32>,
    return
  }
}

</mosaic_0001>

<llo_original>
// kernel: deepnet_forward.1
$region0: #{deepnet_forward.1}
  #allocation0 [shape = 'u32[]', space=smem, size = 0x4, offset = 0x4, fixed_abs, tag = 'smem constant byte address 0x4 - core index']
  #allocation1 [shape = 'u32[72,128]{1,0:T(1,128)}', space=vmem, size = 0x9000, scoped, tag = 'internal scratch']
  %s0 = inlined_call_operand.vmem [shape: bf16[240,32], index: 0, kind: input, shape index: {}]
  %s1 = inlined_call_operand.vmem [shape: bf16[64,112], index: 1, kind: input, shape index: {}]
  %s2 = inlined_call_operand.vmem [shape: bf16[32,512], index: 2, kind: input, shape index: {}]
  %s3 = inlined_call_operand.vmem [shape: bf16[112,128], index: 3, kind: input, shape index: {}]
  %s4 = inlined_call_operand.vmem [shape: bf16[16,128,64], index: 4, kind: input, shape index: {}]
  %s5 = inlined_call_operand.vmem [shape: f32[8,512], index: 5, kind: input, shape index: {}]
  %s6 = inlined_call_operand.vmem [shape: f32[16,1], index: 6, kind: output, shape index: {}]
  %s7 = sld [smem:[#allocation0]]
  $region34: #{deepnet_forward.1} parent=0
    _
  %s9 = ssub.s32 1, %s7
  %s10 = scalar_select 0, %s9, %s7
  // Predicated region
  $region2: #{deepnet_forward.1} parent=0 // pred_check
    _
  $region3: #{deepnet_forward.1} parent=0 // pred_check_branch
    %12 = sbr.rel (0) target = $region5
  $region4: #{deepnet_forward.1} parent=0 // pred_region
    _
  $region5: #{deepnet_forward.1} parent=0 // pred_fallthru
    _
  // Predicated region
  $region6: #{deepnet_forward.1} parent=0 // pred_check
    _
  $region7: #{deepnet_forward.1} parent=0 // pred_check_branch
    %14 = sbr.rel (0) target = $region9
  $region8: #{deepnet_forward.1} parent=0 // pred_region
    _
  $region9: #{deepnet_forward.1} parent=0 // pred_fallthru
    _
  // Predicated region
  $region10: #{deepnet_forward.1} parent=0 // pred_check
    _
  $region11: #{deepnet_forward.1} parent=0 // pred_check_branch
    %16 = sbr.rel (0) target = $region13
  $region12: #{deepnet_forward.1} parent=0 // pred_region
    _
  $region13: #{deepnet_forward.1} parent=0 // pred_fallthru
    _
  // Predicated region
  $region14: #{deepnet_forward.1} parent=0 // pred_check
    _
  $region15: #{deepnet_forward.1} parent=0 // pred_check_branch
    %18 = sbr.rel (0) target = $region17
  $region16: #{deepnet_forward.1} parent=0 // pred_region
    _
  $region17: #{deepnet_forward.1} parent=0 // pred_fallthru
    _
  // Predicated region
  $region18: #{deepnet_forward.1} parent=0 // pred_check
    _
  $region19: #{deepnet_forward.1} parent=0 // pred_check_branch
    %20 = sbr.rel (0) target = $region21
  $region20: #{deepnet_forward.1} parent=0 // pred_region
    _
  $region21: #{deepnet_forward.1} parent=0 // pred_fallthru
    _
  // Predicated region
  $region22: #{deepnet_forward.1} parent=0 // pred_check
    _
  $region23: #{deepnet_forward.1} parent=0 // pred_check_branch
    %22 = sbr.rel (0) target = $region25
  $region24: #{deepnet_forward.1} parent=0 // pred_region
    _
  $region25: #{deepnet_forward.1} parent=0 // pred_fallthru
    _
  %v24 = vld [vmem:[%s0] sm:$0xf]
  %v25 = vld [vmem:[%s0 + $0x4] sm:$0xf]
  %v26 = vld [vmem:[%s0 + $0x8] sm:$0xf]
  %v27 = vld [vmem:[%s0 + $0xc] sm:$0xf]
  %v28 = vld [vmem:[%s0 + $0x10] sm:$0xf]
  %v29 = vld [vmem:[%s0 + $0x14] sm:$0xf]
  %v30 = vld [vmem:[%s0 + $0x18] sm:$0xf]
  %v31 = vld [vmem:[%s0 + $0x1c] sm:$0xf]
  %v32 = vld [vmem:[%s0 + $0x20] sm:$0xf]
  %v33 = vld [vmem:[%s0 + $0x24] sm:$0xf]
  %v34 = vld [vmem:[%s0 + $0x28] sm:$0xf]
  %v35 = vld [vmem:[%s0 + $0x2c] sm:$0xf]
  %v36 = vld [vmem:[%s0 + $0x30] sm:$0xf]
  %v37 = vld [vmem:[%s0 + $0x34] sm:$0xf]
  %v38 = vld [vmem:[%s0 + $0x38] sm:$0xf]
  %v39 = vld [vmem:[%s0 + $0x3c] sm:$0xf]
  %v40 = vld [vmem:[%s0 + $0x40] sm:$0xf]
  %v41 = vld [vmem:[%s0 + $0x44] sm:$0xf]
  %v42 = vld [vmem:[%s0 + $0x48] sm:$0xf]
  %v43 = vld [vmem:[%s0 + $0x4c] sm:$0xf]
  %v44 = vld [vmem:[%s0 + $0x50] sm:$0xf]
  %v45 = vld [vmem:[%s0 + $0x54] sm:$0xf]
  %v46 = vld [vmem:[%s0 + $0x58] sm:$0xf]
  %v47 = vld [vmem:[%s0 + $0x5c] sm:$0xf]
  %v48 = vld [vmem:[%s0 + $0x60] sm:$0xf]
  %v49 = vld [vmem:[%s0 + $0x64] sm:$0xf]
  %v50 = vld [vmem:[%s0 + $0x68] sm:$0xf]
  %v51 = vld [vmem:[%s0 + $0x6c] sm:$0xf]
  %v52 = vld [vmem:[%s0 + $0x70] sm:$0xf]
  %v53 = vld [vmem:[%s0 + $0x74] sm:$0xf]
  %v54 = vld [vmem:[%s2] sm:$0xff]
  %v55 = vld [vmem:[%s2 + $0x8] sm:$0xff]
  %v56 = vld [vmem:[%s2 + $0x10] sm:$0xff]
  %v57 = vld [vmem:[%s2 + $0x18] sm:$0xff]
  %v58 = vld [vmem:[%s2 + $0x20] sm:$0xff]
  %v59 = vld [vmem:[%s2 + $0x28] sm:$0xff]
  %v60 = vld [vmem:[%s2 + $0x30] sm:$0xff]
  %v61 = vld [vmem:[%s2 + $0x38] sm:$0xff]
  %v92 = vunpack.c.l.b16 %v24
  %v93 = vunpack.c.l.b16 %v25
  %v94 = vunpack.c.l.b16 %v26
  %v95 = vunpack.c.l.b16 %v27
  %v96 = vunpack.c.l.b16 %v28
  %v97 = vunpack.c.l.b16 %v29
  %v98 = vunpack.c.l.b16 %v30
  %v99 = vunpack.c.l.b16 %v31
  %v100 = vunpack.c.l.b16 %v32
  %v101 = vunpack.c.l.b16 %v33
  %v102 = vunpack.c.l.b16 %v34
  %v103 = vunpack.c.l.b16 %v35
  %v104 = vunpack.c.l.b16 %v36
  %v105 = vunpack.c.l.b16 %v37
  %v106 = vunpack.c.l.b16 %v38
  %v107 = vunpack.c.l.b16 %v39
  %v108 = vunpack.c.l.b16 %v40
  %v109 = vunpack.c.l.b16 %v41
  %v110 = vunpack.c.l.b16 %v42
  %v111 = vunpack.c.l.b16 %v43
  %v112 = vunpack.c.l.b16 %v44
  %v113 = vunpack.c.l.b16 %v45
  %v114 = vunpack.c.l.b16 %v46
  %v115 = vunpack.c.l.b16 %v47
  %v116 = vunpack.c.l.b16 %v48
  %v117 = vunpack.c.l.b16 %v49
  %v118 = vunpack.c.l.b16 %v50
  %v119 = vunpack.c.l.b16 %v51
  %v120 = vunpack.c.l.b16 %v52
  %v121 = vunpack.c.l.b16 %v53
  %v122 = vpack.c.b16 %v93, %v92
  %v123 = vpack.c.b16 %v95, %v94
  %v124 = vpack.c.b16 %v97, %v96
  %v125 = vpack.c.b16 %v99, %v98
  %v126 = vpack.c.b16 %v101, %v100
  %v127 = vpack.c.b16 %v103, %v102
  %v128 = vpack.c.b16 %v105, %v104
  %v129 = vpack.c.b16 %v107, %v106
  %v130 = vpack.c.b16 %v109, %v108
  %v131 = vpack.c.b16 %v111, %v110
  %v132 = vpack.c.b16 %v113, %v112
  %v133 = vpack.c.b16 %v115, %v114
  %v134 = vpack.c.b16 %v117, %v116
  %v135 = vpack.c.b16 %v119, %v118
  %v136 = vpack.c.b16 %v121, %v120
  %v145 = vunpack.c.l.b16 %v54
  %v146 = vunpack.c.h.b16 %v54
  %v147 = vunpack.c.l.b16 %v55
  %v148 = vunpack.c.h.b16 %v55
  %v149 = vunpack.c.l.b16 %v56
  %v150 = vunpack.c.h.b16 %v56
  %v151 = vunpack.c.l.b16 %v57
  %v152 = vunpack.c.h.b16 %v57
  %v153 = vunpack.c.l.b16 %v58
  %v154 = vunpack.c.h.b16 %v58
  %v155 = vunpack.c.l.b16 %v59
  %v156 = vunpack.c.h.b16 %v59
  %v157 = vunpack.c.l.b16 %v60
  %v158 = vunpack.c.h.b16 %v60
  %v159 = vunpack.c.l.b16 %v61
  %v160 = vunpack.c.h.b16 %v61
  %v161 = vpack.c.b16 %v149, %v145
  %v162 = vpack.c.b16 %v150, %v146
  %v163 = vpack.c.b16 %v151, %v147
  %v164 = vpack.c.b16 %v152, %v148
  %v165 = vpack.c.b16 %v157, %v153
  %v166 = vpack.c.b16 %v158, %v154
  %v167 = vpack.c.b16 %v159, %v155
  %v168 = vpack.c.b16 %v160, %v156
  %vm177 = vcmask 261120
  %v179 = vsel %vm177, %v122, 0
  %v182 = vsel %vm177, %v123, 0
  %v185 = vsel %vm177, %v124, 0
  %v188 = vsel %vm177, %v125, 0
  %v191 = vsel %vm177, %v126, 0
  %v194 = vsel %vm177, %v127, 0
  %v197 = vsel %vm177, %v128, 0
  %v200 = vsel %vm177, %v129, 0
  %v203 = vsel %vm177, %v130, 0
  %v206 = vsel %vm177, %v131, 0
  %v209 = vsel %vm177, %v132, 0
  %v212 = vsel %vm177, %v133, 0
  %v215 = vsel %vm177, %v134, 0
  %v218 = vsel %vm177, %v135, 0
  %v221 = vsel %vm177, %v136, 0
  %223 = vmatpush.bf16.msra.mxu0 0
  %224 = vmatpush.bf16.msra.mxu0 0
  %225 = vmatpush.bf16.msra.mxu0 0
  %226 = vmatpush.bf16.msra.mxu0 0
  %227 = vmatpush.bf16.msra.mxu0 0
  %228 = vmatpush.bf16.msra.mxu0 0
  %229 = vmatpush.bf16.msra.mxu0 %v165
  %230 = vmatpush.bf16.msra.mxu0 %v161
  %231 = vmatmul.bf16.gmra.mxu0 %v179
  %v232 = vpop.f32.mrf.mxu0
  %v233 = vadd.f32 0.0, %v232
  %v234 = vpop.f32.mrf.mxu0
  %v235 = vadd.f32 0.0, %v234
  %236 = vmatmul.bf16.gmra.mxu0 %v182
  %v237 = vpop.f32.mrf.mxu0
  %v238 = vadd.f32 0.0, %v237
  %v239 = vpop.f32.mrf.mxu0
  %v240 = vadd.f32 0.0, %v239
  %241 = vmatmul.bf16.gmra.mxu0 %v185
  %v242 = vpop.f32.mrf.mxu0
  %v243 = vadd.f32 0.0, %v242
  %v244 = vpop.f32.mrf.mxu0
  %v245 = vadd.f32 0.0, %v244
  %246 = vmatmul.bf16.gmra.mxu0 %v188
  %v247 = vpop.f32.mrf.mxu0
  %v248 = vadd.f32 0.0, %v247
  %v249 = vpop.f32.mrf.mxu0
  %v250 = vadd.f32 0.0, %v249
  %251 = vmatmul.bf16.gmra.mxu0 %v191
  %v252 = vpop.f32.mrf.mxu0
  %v253 = vadd.f32 0.0, %v252
  %v254 = vpop.f32.mrf.mxu0
  %v255 = vadd.f32 0.0, %v254
  %256 = vmatmul.bf16.gmra.mxu0 %v194
  %v257 = vpop.f32.mrf.mxu0
  %v258 = vadd.f32 0.0, %v257
  %v259 = vpop.f32.mrf.mxu0
  %v260 = vadd.f32 0.0, %v259
  %261 = vmatmul.bf16.gmra.mxu0 %v197
  %v262 = vpop.f32.mrf.mxu0
  %v263 = vadd.f32 0.0, %v262
  %v264 = vpop.f32.mrf.mxu0
  %v265 = vadd.f32 0.0, %v264
  %266 = vmatmul.bf16.gmra.mxu0 %v200
  %v267 = vpop.f32.mrf.mxu0
  %v268 = vadd.f32 0.0, %v267
  %v269 = vpop.f32.mrf.mxu0
  %v270 = vadd.f32 0.0, %v269
  %271 = vmatmul.bf16.gmra.mxu0 %v203
  %v272 = vpop.f32.mrf.mxu0
  %v273 = vadd.f32 0.0, %v272
  %v274 = vpop.f32.mrf.mxu0
  %v275 = vadd.f32 0.0, %v274
  %276 = vmatmul.bf16.gmra.mxu0 %v206
  %v277 = vpop.f32.mrf.mxu0
  %v278 = vadd.f32 0.0, %v277
  %v279 = vpop.f32.mrf.mxu0
  %v280 = vadd.f32 0.0, %v279
  %281 = vmatmul.bf16.gmra.mxu0 %v209
  %v282 = vpop.f32.mrf.mxu0
  %v283 = vadd.f32 0.0, %v282
  %v284 = vpop.f32.mrf.mxu0
  %v285 = vadd.f32 0.0, %v284
  %286 = vmatmul.bf16.gmra.mxu0 %v212
  %v287 = vpop.f32.mrf.mxu0
  %v288 = vadd.f32 0.0, %v287
  %v289 = vpop.f32.mrf.mxu0
  %v290 = vadd.f32 0.0, %v289
  %291 = vmatmul.bf16.gmra.mxu0 %v215
  %v292 = vpop.f32.mrf.mxu0
  %v293 = vadd.f32 0.0, %v292
  %v294 = vpop.f32.mrf.mxu0
  %v295 = vadd.f32 0.0, %v294
  %296 = vmatmul.bf16.gmra.mxu0 %v218
  %v297 = vpop.f32.mrf.mxu0
  %v298 = vadd.f32 0.0, %v297
  %v299 = vpop.f32.mrf.mxu0
  %v300 = vadd.f32 0.0, %v299
  %301 = vmatmul.bf16.gmra.mxu0 %v221
  %v302 = vpop.f32.mrf.mxu0
  %v303 = vadd.f32 0.0, %v302
  %v304 = vpop.f32.mrf.mxu0
  %v305 = vadd.f32 0.0, %v304
  %306 = vdwg.mxu0
  %307 = vmatpush.bf16.msra.mxu0 0
  %308 = vmatpush.bf16.msra.mxu0 0
  %309 = vmatpush.bf16.msra.mxu0 0
  %310 = vmatpush.bf16.msra.mxu0 0
  %311 = vmatpush.bf16.msra.mxu0 0
  %312 = vmatpush.bf16.msra.mxu0 0
  %313 = vmatpush.bf16.msra.mxu0 %v166
  %314 = vmatpush.bf16.msra.mxu0 %v162
  %315 = vmatmul.bf16.gmra.mxu0 %v179
  %v316 = vpop.f32.mrf.mxu0
  %v317 = vadd.f32 0.0, %v316
  %v318 = vpop.f32.mrf.mxu0
  %v319 = vadd.f32 0.0, %v318
  %320 = vmatmul.bf16.gmra.mxu0 %v182
  %v321 = vpop.f32.mrf.mxu0
  %v322 = vadd.f32 0.0, %v321
  %v323 = vpop.f32.mrf.mxu0
  %v324 = vadd.f32 0.0, %v323
  %325 = vmatmul.bf16.gmra.mxu0 %v185
  %v326 = vpop.f32.mrf.mxu0
  %v327 = vadd.f32 0.0, %v326
  %v328 = vpop.f32.mrf.mxu0
  %v329 = vadd.f32 0.0, %v328
  %330 = vmatmul.bf16.gmra.mxu0 %v188
  %v331 = vpop.f32.mrf.mxu0
  %v332 = vadd.f32 0.0, %v331
  %v333 = vpop.f32.mrf.mxu0
  %v334 = vadd.f32 0.0, %v333
  %335 = vmatmul.bf16.gmra.mxu0 %v191
  %v336 = vpop.f32.mrf.mxu0
  %v337 = vadd.f32 0.0, %v336
  %v338 = vpop.f32.mrf.mxu0
  %v339 = vadd.f32 0.0, %v338
  %340 = vmatmul.bf16.gmra.mxu0 %v194
  %v341 = vpop.f32.mrf.mxu0
  %v342 = vadd.f32 0.0, %v341
  %v343 = vpop.f32.mrf.mxu0
  %v344 = vadd.f32 0.0, %v343
  %345 = vmatmul.bf16.gmra.mxu0 %v197
  %v346 = vpop.f32.mrf.mxu0
  %v347 = vadd.f32 0.0, %v346
  %v348 = vpop.f32.mrf.mxu0
  %v349 = vadd.f32 0.0, %v348
  %350 = vmatmul.bf16.gmra.mxu0 %v200
  %v351 = vpop.f32.mrf.mxu0
  %v352 = vadd.f32 0.0, %v351
  %v353 = vpop.f32.mrf.mxu0
  %v354 = vadd.f32 0.0, %v353
  %355 = vmatmul.bf16.gmra.mxu0 %v203
  %v356 = vpop.f32.mrf.mxu0
  %v357 = vadd.f32 0.0, %v356
  %v358 = vpop.f32.mrf.mxu0
  %v359 = vadd.f32 0.0, %v358
  %360 = vmatmul.bf16.gmra.mxu0 %v206
  %v361 = vpop.f32.mrf.mxu0
  %v362 = vadd.f32 0.0, %v361
  %v363 = vpop.f32.mrf.mxu0
  %v364 = vadd.f32 0.0, %v363
  %365 = vmatmul.bf16.gmra.mxu0 %v209
  %v366 = vpop.f32.mrf.mxu0
  %v367 = vadd.f32 0.0, %v366
  %v368 = vpop.f32.mrf.mxu0
  %v369 = vadd.f32 0.0, %v368
  %370 = vmatmul.bf16.gmra.mxu0 %v212
  %v371 = vpop.f32.mrf.mxu0
  %v372 = vadd.f32 0.0, %v371
  %v373 = vpop.f32.mrf.mxu0
  %v374 = vadd.f32 0.0, %v373
  %375 = vmatmul.bf16.gmra.mxu0 %v215
  %v376 = vpop.f32.mrf.mxu0
  %v377 = vadd.f32 0.0, %v376
  %v378 = vpop.f32.mrf.mxu0
  %v379 = vadd.f32 0.0, %v378
  %380 = vmatmul.bf16.gmra.mxu0 %v218
  %v381 = vpop.f32.mrf.mxu0
  %v382 = vadd.f32 0.0, %v381
  %v383 = vpop.f32.mrf.mxu0
  %v384 = vadd.f32 0.0, %v383
  %385 = vmatmul.bf16.gmra.mxu0 %v221
  %v386 = vpop.f32.mrf.mxu0
  %v387 = vadd.f32 0.0, %v386
  %v388 = vpop.f32.mrf.mxu0
  %v389 = vadd.f32 0.0, %v388
  %390 = vdwg.mxu0
  %391 = vmatpush.bf16.msra.mxu0 0
  %392 = vmatpush.bf16.msra.mxu0 0
  %393 = vmatpush.bf16.msra.mxu0 0
  %394 = vmatpush.bf16.msra.mxu0 0
  %395 = vmatpush.bf16.msra.mxu0 0
  %396 = vmatpush.bf16.msra.mxu0 0
  %397 = vmatpush.bf16.msra.mxu0 %v167
  %398 = vmatpush.bf16.msra.mxu0 %v163
  %399 = vmatmul.bf16.gmra.mxu0 %v179
  %v400 = vpop.f32.mrf.mxu0
  %v401 = vadd.f32 0.0, %v400
  %v402 = vpop.f32.mrf.mxu0
  %v403 = vadd.f32 0.0, %v402
  %404 = vmatmul.bf16.gmra.mxu0 %v182
  %v405 = vpop.f32.mrf.mxu0
  %v406 = vadd.f32 0.0, %v405
  %v407 = vpop.f32.mrf.mxu0
  %v408 = vadd.f32 0.0, %v407
  %409 = vmatmul.bf16.gmra.mxu0 %v185
  %v410 = vpop.f32.mrf.mxu0
  %v411 = vadd.f32 0.0, %v410
  %v412 = vpop.f32.mrf.mxu0
  %v413 = vadd.f32 0.0, %v412
  %414 = vmatmul.bf16.gmra.mxu0 %v188
  %v415 = vpop.f32.mrf.mxu0
  %v416 = vadd.f32 0.0, %v415
  %v417 = vpop.f32.mrf.mxu0
  %v418 = vadd.f32 0.0, %v417
  %419 = vmatmul.bf16.gmra.mxu0 %v191
  %v420 = vpop.f32.mrf.mxu0
  %v421 = vadd.f32 0.0, %v420
  %v422 = vpop.f32.mrf.mxu0
  %v423 = vadd.f32 0.0, %v422
  %424 = vmatmul.bf16.gmra.mxu0 %v194
  %v425 = vpop.f32.mrf.mxu0
  %v426 = vadd.f32 0.0, %v425
  %v427 = vpop.f32.mrf.mxu0
  %v428 = vadd.f32 0.0, %v427
  %429 = vmatmul.bf16.gmra.mxu0 %v197
  %v430 = vpop.f32.mrf.mxu0
  %v431 = vadd.f32 0.0, %v430
  %v432 = vpop.f32.mrf.mxu0
  %v433 = vadd.f32 0.0, %v432
  %434 = vmatmul.bf16.gmra.mxu0 %v200
  %v435 = vpop.f32.mrf.mxu0
  %v436 = vadd.f32 0.0, %v435
  %v437 = vpop.f32.mrf.mxu0
  %v438 = vadd.f32 0.0, %v437
  %439 = vmatmul.bf16.gmra.mxu0 %v203
  %v440 = vpop.f32.mrf.mxu0
  %v441 = vadd.f32 0.0, %v440
  %v442 = vpop.f32.mrf.mxu0
  %v443 = vadd.f32 0.0, %v442
  %444 = vmatmul.bf16.gmra.mxu0 %v206
  %v445 = vpop.f32.mrf.mxu0
  %v446 = vadd.f32 0.0, %v445
  %v447 = vpop.f32.mrf.mxu0
  %v448 = vadd.f32 0.0, %v447
  %449 = vmatmul.bf16.gmra.mxu0 %v209
  %v450 = vpop.f32.mrf.mxu0
  %v451 = vadd.f32 0.0, %v450
  %v452 = vpop.f32.mrf.mxu0
  %v453 = vadd.f32 0.0, %v452
  %454 = vmatmul.bf16.gmra.mxu0 %v212
  %v455 = vpop.f32.mrf.mxu0
  %v456 = vadd.f32 0.0, %v455
  %v457 = vpop.f32.mrf.mxu0
  %v458 = vadd.f32 0.0, %v457
  %459 = vmatmul.bf16.gmra.mxu0 %v215
  %v460 = vpop.f32.mrf.mxu0
  %v461 = vadd.f32 0.0, %v460
  %v462 = vpop.f32.mrf.mxu0
  %v463 = vadd.f32 0.0, %v462
  %464 = vmatmul.bf16.gmra.mxu0 %v218
  %v465 = vpop.f32.mrf.mxu0
  %v466 = vadd.f32 0.0, %v465
  %v467 = vpop.f32.mrf.mxu0
  %v468 = vadd.f32 0.0, %v467
  %469 = vmatmul.bf16.gmra.mxu0 %v221
  %v470 = vpop.f32.mrf.mxu0
  %v471 = vadd.f32 0.0, %v470
  %v472 = vpop.f32.mrf.mxu0
  %v473 = vadd.f32 0.0, %v472
  %474 = vdwg.mxu0
  %475 = vmatpush.bf16.msra.mxu0 0
  %476 = vmatpush.bf16.msra.mxu0 0
  %477 = vmatpush.bf16.msra.mxu0 0
  %478 = vmatpush.bf16.msra.mxu0 0
  %479 = vmatpush.bf16.msra.mxu0 0
  %480 = vmatpush.bf16.msra.mxu0 0
  %481 = vmatpush.bf16.msra.mxu0 %v168
  %482 = vmatpush.bf16.msra.mxu0 %v164
  %483 = vmatmul.bf16.gmra.mxu0 %v179
  %v484 = vpop.f32.mrf.mxu0
  %v485 = vadd.f32 0.0, %v484
  %v486 = vpop.f32.mrf.mxu0
  %v487 = vadd.f32 0.0, %v486
  %488 = vmatmul.bf16.gmra.mxu0 %v182
  %v489 = vpop.f32.mrf.mxu0
  %v490 = vadd.f32 0.0, %v489
  %v491 = vpop.f32.mrf.mxu0
  %v492 = vadd.f32 0.0, %v491
  %493 = vmatmul.bf16.gmra.mxu0 %v185
  %v494 = vpop.f32.mrf.mxu0
  %v495 = vadd.f32 0.0, %v494
  %v496 = vpop.f32.mrf.mxu0
  %v497 = vadd.f32 0.0, %v496
  %498 = vmatmul.bf16.gmra.mxu0 %v188
  %v499 = vpop.f32.mrf.mxu0
  %v500 = vadd.f32 0.0, %v499
  %v501 = vpop.f32.mrf.mxu0
  %v502 = vadd.f32 0.0, %v501
  %503 = vmatmul.bf16.gmra.mxu0 %v191
  %v504 = vpop.f32.mrf.mxu0
  %v505 = vadd.f32 0.0, %v504
  %v506 = vpop.f32.mrf.mxu0
  %v507 = vadd.f32 0.0, %v506
  %508 = vmatmul.bf16.gmra.mxu0 %v194
  %v509 = vpop.f32.mrf.mxu0
  %v510 = vadd.f32 0.0, %v509
  %v511 = vpop.f32.mrf.mxu0
  %v512 = vadd.f32 0.0, %v511
  %513 = vmatmul.bf16.gmra.mxu0 %v197
  %v514 = vpop.f32.mrf.mxu0
  %v515 = vadd.f32 0.0, %v514
  %v516 = vpop.f32.mrf.mxu0
  %v517 = vadd.f32 0.0, %v516
  %518 = vmatmul.bf16.gmra.mxu0 %v200
  %v519 = vpop.f32.mrf.mxu0
  %v520 = vadd.f32 0.0, %v519
  %v521 = vpop.f32.mrf.mxu0
  %v522 = vadd.f32 0.0, %v521
  %523 = vmatmul.bf16.gmra.mxu0 %v203
  %v524 = vpop.f32.mrf.mxu0
  %v525 = vadd.f32 0.0, %v524
  %v526 = vpop.f32.mrf.mxu0
  %v527 = vadd.f32 0.0, %v526
  %528 = vmatmul.bf16.gmra.mxu0 %v206
  %v529 = vpop.f32.mrf.mxu0
  %v530 = vadd.f32 0.0, %v529
  %v531 = vpop.f32.mrf.mxu0
  %v532 = vadd.f32 0.0, %v531
  %533 = vmatmul.bf16.gmra.mxu0 %v209
  %v534 = vpop.f32.mrf.mxu0
  %v535 = vadd.f32 0.0, %v534
  %v536 = vpop.f32.mrf.mxu0
  %v537 = vadd.f32 0.0, %v536
  %538 = vmatmul.bf16.gmra.mxu0 %v212
  %v539 = vpop.f32.mrf.mxu0
  %v540 = vadd.f32 0.0, %v539
  %v541 = vpop.f32.mrf.mxu0
  %v542 = vadd.f32 0.0, %v541
  %543 = vmatmul.bf16.gmra.mxu0 %v215
  %v544 = vpop.f32.mrf.mxu0
  %v545 = vadd.f32 0.0, %v544
  %v546 = vpop.f32.mrf.mxu0
  %v547 = vadd.f32 0.0, %v546
  %548 = vmatmul.bf16.gmra.mxu0 %v218
  %v549 = vpop.f32.mrf.mxu0
  %v550 = vadd.f32 0.0, %v549
  %v551 = vpop.f32.mrf.mxu0
  %v552 = vadd.f32 0.0, %v551
  %553 = vmatmul.bf16.gmra.mxu0 %v221
  %v554 = vpop.f32.mrf.mxu0
  %v555 = vadd.f32 0.0, %v554
  %v556 = vpop.f32.mrf.mxu0
  %v557 = vadd.f32 0.0, %v556
  %558 = vdwg.mxu0
  %v559 = vld [vmem:[%s5] ss:$8 sm:$0xf]
  %v561 = vperm.slane %v559, 0
  %v562 = vperm.slane %v559, 1
  %v563 = vperm.slane %v559, 2
  %v564 = vperm.slane %v559, 3
  %v569 = vmul.f32 %v233, %v561
  %v570 = vmul.f32 %v317, %v562
  %v571 = vmul.f32 %v401, %v563
  %v572 = vmul.f32 %v485, %v564
  %v573 = vmul.f32 %v235, %v561
  %v574 = vmul.f32 %v319, %v562
  %v575 = vmul.f32 %v403, %v563
  %v576 = vmul.f32 %v487, %v564
  %v577 = vmul.f32 %v238, %v561
  %v578 = vmul.f32 %v322, %v562
  %v579 = vmul.f32 %v406, %v563
  %v580 = vmul.f32 %v490, %v564
  %v581 = vmul.f32 %v240, %v561
  %v582 = vmul.f32 %v324, %v562
  %v583 = vmul.f32 %v408, %v563
  %v584 = vmul.f32 %v492, %v564
  %v585 = vmul.f32 %v243, %v561
  %v586 = vmul.f32 %v327, %v562
  %v587 = vmul.f32 %v411, %v563
  %v588 = vmul.f32 %v495, %v564
  %v589 = vmul.f32 %v245, %v561
  %v590 = vmul.f32 %v329, %v562
  %v591 = vmul.f32 %v413, %v563
  %v592 = vmul.f32 %v497, %v564
  %v593 = vmul.f32 %v248, %v561
  %v594 = vmul.f32 %v332, %v562
  %v595 = vmul.f32 %v416, %v563
  %v596 = vmul.f32 %v500, %v564
  %v597 = vmul.f32 %v250, %v561
  %v598 = vmul.f32 %v334, %v562
  %v599 = vmul.f32 %v418, %v563
  %v600 = vmul.f32 %v502, %v564
  %v601 = vmul.f32 %v253, %v561
  %v602 = vmul.f32 %v337, %v562
  %v603 = vmul.f32 %v421, %v563
  %v604 = vmul.f32 %v505, %v564
  %v605 = vmul.f32 %v255, %v561
  %v606 = vmul.f32 %v339, %v562
  %v607 = vmul.f32 %v423, %v563
  %v608 = vmul.f32 %v507, %v564
  %v609 = vmul.f32 %v258, %v561
  %v610 = vmul.f32 %v342, %v562
  %v611 = vmul.f32 %v426, %v563
  %v612 = vmul.f32 %v510, %v564
  %v613 = vmul.f32 %v260, %v561
  %v614 = vmul.f32 %v344, %v562
  %v615 = vmul.f32 %v428, %v563
  %v616 = vmul.f32 %v512, %v564
  %v617 = vmul.f32 %v263, %v561
  %v618 = vmul.f32 %v347, %v562
  %v619 = vmul.f32 %v431, %v563
  %v620 = vmul.f32 %v515, %v564
  %v621 = vmul.f32 %v265, %v561
  %v622 = vmul.f32 %v349, %v562
  %v623 = vmul.f32 %v433, %v563
  %v624 = vmul.f32 %v517, %v564
  %v625 = vmul.f32 %v268, %v561
  %v626 = vmul.f32 %v352, %v562
  %v627 = vmul.f32 %v436, %v563
  %v628 = vmul.f32 %v520, %v564
  %v629 = vmul.f32 %v270, %v561
  %v630 = vmul.f32 %v354, %v562
  %v631 = vmul.f32 %v438, %v563
  %v632 = vmul.f32 %v522, %v564
  %v633 = vmul.f32 %v273, %v561
  %v634 = vmul.f32 %v357, %v562
  %v635 = vmul.f32 %v441, %v563
  %v636 = vmul.f32 %v525, %v564
  %v637 = vmul.f32 %v275, %v561
  %v638 = vmul.f32 %v359, %v562
  %v639 = vmul.f32 %v443, %v563
  %v640 = vmul.f32 %v527, %v564
  %v641 = vmul.f32 %v278, %v561
  %v642 = vmul.f32 %v362, %v562
  %v643 = vmul.f32 %v446, %v563
  %v644 = vmul.f32 %v530, %v564
  %v645 = vmul.f32 %v280, %v561
  %v646 = vmul.f32 %v364, %v562
  %v647 = vmul.f32 %v448, %v563
  %v648 = vmul.f32 %v532, %v564
  %v649 = vmul.f32 %v283, %v561
  %v650 = vmul.f32 %v367, %v562
  %v651 = vmul.f32 %v451, %v563
  %v652 = vmul.f32 %v535, %v564
  %v653 = vmul.f32 %v285, %v561
  %v654 = vmul.f32 %v369, %v562
  %v655 = vmul.f32 %v453, %v563
  %v656 = vmul.f32 %v537, %v564
  %v657 = vmul.f32 %v288, %v561
  %v658 = vmul.f32 %v372, %v562
  %v659 = vmul.f32 %v456, %v563
  %v660 = vmul.f32 %v540, %v564
  %v661 = vmul.f32 %v290, %v561
  %v662 = vmul.f32 %v374, %v562
  %v663 = vmul.f32 %v458, %v563
  %v664 = vmul.f32 %v542, %v564
  %v665 = vmul.f32 %v293, %v561
  %v666 = vmul.f32 %v377, %v562
  %v667 = vmul.f32 %v461, %v563
  %v668 = vmul.f32 %v545, %v564
  %v669 = vmul.f32 %v295, %v561
  %v670 = vmul.f32 %v379, %v562
  %v671 = vmul.f32 %v463, %v563
  %v672 = vmul.f32 %v547, %v564
  %v673 = vmul.f32 %v298, %v561
  %v674 = vmul.f32 %v382, %v562
  %v675 = vmul.f32 %v466, %v563
  %v676 = vmul.f32 %v550, %v564
  %v677 = vmul.f32 %v300, %v561
  %v678 = vmul.f32 %v384, %v562
  %v679 = vmul.f32 %v468, %v563
  %v680 = vmul.f32 %v552, %v564
  %v681 = vmul.f32 %v303, %v561
  %v682 = vmul.f32 %v387, %v562
  %v683 = vmul.f32 %v471, %v563
  %v684 = vmul.f32 %v555, %v564
  %v685 = vmul.f32 %v305, %v561
  %v686 = vmul.f32 %v389, %v562
  %v687 = vmul.f32 %v473, %v563
  %v688 = vmul.f32 %v557, %v564
  %s689 = scalar_lea.vmem %s5, 1
  %v690 = vld [vmem:[%s689] ss:$8 sm:$0xf]
  %v692 = vperm.slane %v690, 0
  %v693 = vperm.slane %v690, 1
  %v694 = vperm.slane %v690, 2
  %v695 = vperm.slane %v690, 3
  %v700 = vadd.f32 %v569, %v692
  %v701 = vadd.f32 %v570, %v693
  %v702 = vadd.f32 %v571, %v694
  %v703 = vadd.f32 %v572, %v695
  %v704 = vadd.f32 %v573, %v692
  %v705 = vadd.f32 %v574, %v693
  %v706 = vadd.f32 %v575, %v694
  %v707 = vadd.f32 %v576, %v695
  %v708 = vadd.f32 %v577, %v692
  %v709 = vadd.f32 %v578, %v693
  %v710 = vadd.f32 %v579, %v694
  %v711 = vadd.f32 %v580, %v695
  %v712 = vadd.f32 %v581, %v692
  %v713 = vadd.f32 %v582, %v693
  %v714 = vadd.f32 %v583, %v694
  %v715 = vadd.f32 %v584, %v695
  %v716 = vadd.f32 %v585, %v692
  %v717 = vadd.f32 %v586, %v693
  %v718 = vadd.f32 %v587, %v694
  %v719 = vadd.f32 %v588, %v695
  %v720 = vadd.f32 %v589, %v692
  %v721 = vadd.f32 %v590, %v693
  %v722 = vadd.f32 %v591, %v694
  %v723 = vadd.f32 %v592, %v695
  %v724 = vadd.f32 %v593, %v692
  %v725 = vadd.f32 %v594, %v693
  %v726 = vadd.f32 %v595, %v694
  %v727 = vadd.f32 %v596, %v695
  %v728 = vadd.f32 %v597, %v692
  %v729 = vadd.f32 %v598, %v693
  %v730 = vadd.f32 %v599, %v694
  %v731 = vadd.f32 %v600, %v695
  %v732 = vadd.f32 %v601, %v692
  %v733 = vadd.f32 %v602, %v693
  %v734 = vadd.f32 %v603, %v694
  %v735 = vadd.f32 %v604, %v695
  %v736 = vadd.f32 %v605, %v692
  %v737 = vadd.f32 %v606, %v693
  %v738 = vadd.f32 %v607, %v694
  %v739 = vadd.f32 %v608, %v695
  %v740 = vadd.f32 %v609, %v692
  %v741 = vadd.f32 %v610, %v693
  %v742 = vadd.f32 %v611, %v694
  %v743 = vadd.f32 %v612, %v695
  %v744 = vadd.f32 %v613, %v692
  %v745 = vadd.f32 %v614, %v693
  %v746 = vadd.f32 %v615, %v694
  %v747 = vadd.f32 %v616, %v695
  %v748 = vadd.f32 %v617, %v692
  %v749 = vadd.f32 %v618, %v693
  %v750 = vadd.f32 %v619, %v694
  %v751 = vadd.f32 %v620, %v695
  %v752 = vadd.f32 %v621, %v692
  %v753 = vadd.f32 %v622, %v693
  %v754 = vadd.f32 %v623, %v694
  %v755 = vadd.f32 %v624, %v695
  %v756 = vadd.f32 %v625, %v692
  %v757 = vadd.f32 %v626, %v693
  %v758 = vadd.f32 %v627, %v694
  %v759 = vadd.f32 %v628, %v695
  %v760 = vadd.f32 %v629, %v692
  %v761 = vadd.f32 %v630, %v693
  %v762 = vadd.f32 %v631, %v694
  %v763 = vadd.f32 %v632, %v695
  %v764 = vadd.f32 %v633, %v692
  %v765 = vadd.f32 %v634, %v693
  %v766 = vadd.f32 %v635, %v694
  %v767 = vadd.f32 %v636, %v695
  %v768 = vadd.f32 %v637, %v692
  %v769 = vadd.f32 %v638, %v693
  %v770 = vadd.f32 %v639, %v694
  %v771 = vadd.f32 %v640, %v695
  %v772 = vadd.f32 %v641, %v692
  %v773 = vadd.f32 %v642, %v693
  %v774 = vadd.f32 %v643, %v694
  %v775 = vadd.f32 %v644, %v695
  %v776 = vadd.f32 %v645, %v692
  %v777 = vadd.f32 %v646, %v693
  %v778 = vadd.f32 %v647, %v694
  %v779 = vadd.f32 %v648, %v695
  %v780 = vadd.f32 %v649, %v692
  %v781 = vadd.f32 %v650, %v693
  %v782 = vadd.f32 %v651, %v694
  %v783 = vadd.f32 %v652, %v695
  %v784 = vadd.f32 %v653, %v692
  %v785 = vadd.f32 %v654, %v693
  %v786 = vadd.f32 %v655, %v694
  %v787 = vadd.f32 %v656, %v695
  %v788 = vadd.f32 %v657, %v692
  %v789 = vadd.f32 %v658, %v693
  %v790 = vadd.f32 %v659, %v694
  %v791 = vadd.f32 %v660, %v695
  %v792 = vadd.f32 %v661, %v692
  %v793 = vadd.f32 %v662, %v693
  %v794 = vadd.f32 %v663, %v694
  %v795 = vadd.f32 %v664, %v695
  %v796 = vadd.f32 %v665, %v692
  %v797 = vadd.f32 %v666, %v693
  %v798 = vadd.f32 %v667, %v694
  %v799 = vadd.f32 %v668, %v695
  %v800 = vadd.f32 %v669, %v692
  %v801 = vadd.f32 %v670, %v693
  %v802 = vadd.f32 %v671, %v694
  %v803 = vadd.f32 %v672, %v695
  %v804 = vadd.f32 %v673, %v692
  %v805 = vadd.f32 %v674, %v693
  %v806 = vadd.f32 %v675, %v694
  %v807 = vadd.f32 %v676, %v695
  %v808 = vadd.f32 %v677, %v692
  %v809 = vadd.f32 %v678, %v693
  %v810 = vadd.f32 %v679, %v694
  %v811 = vadd.f32 %v680, %v695
  %v812 = vadd.f32 %v681, %v692
  %v813 = vadd.f32 %v682, %v693
  %v814 = vadd.f32 %v683, %v694
  %v815 = vadd.f32 %v684, %v695
  %v816 = vadd.f32 %v685, %v692
  %v817 = vadd.f32 %v686, %v693
  %v818 = vadd.f32 %v687, %v694
  %v819 = vadd.f32 %v688, %v695
  %v820 = vmax.f32 %v700, %v701
  %v821 = vmax.f32 %v704, %v705
  %v822 = vmax.f32 %v708, %v709
  %v823 = vmax.f32 %v712, %v713
  %v824 = vmax.f32 %v716, %v717
  %v825 = vmax.f32 %v720, %v721
  %v826 = vmax.f32 %v724, %v725
  %v827 = vmax.f32 %v728, %v729
  %v828 = vmax.f32 %v732, %v733
  %v829 = vmax.f32 %v736, %v737
  %v830 = vmax.f32 %v740, %v741
  %v831 = vmax.f32 %v744, %v745
  %v832 = vmax.f32 %v748, %v749
  %v833 = vmax.f32 %v752, %v753
  %v834 = vmax.f32 %v756, %v757
  %v835 = vmax.f32 %v760, %v761
  %v836 = vmax.f32 %v764, %v765
  %v837 = vmax.f32 %v768, %v769
  %v838 = vmax.f32 %v772, %v773
  %v839 = vmax.f32 %v776, %v777
  %v840 = vmax.f32 %v780, %v781
  %v841 = vmax.f32 %v784, %v785
  %v842 = vmax.f32 %v788, %v789
  %v843 = vmax.f32 %v792, %v793
  %v844 = vmax.f32 %v796, %v797
  %v845 = vmax.f32 %v800, %v801
  %v846 = vmax.f32 %v804, %v805
  %v847 = vmax.f32 %v808, %v809
  %v848 = vmax.f32 %v812, %v813
  %v849 = vmax.f32 %v816, %v817
  %v850 = vmax.f32 %v702, %v703
  %v851 = vmax.f32 %v706, %v707
  %v852 = vmax.f32 %v710, %v711
  %v853 = vmax.f32 %v714, %v715
  %v854 = vmax.f32 %v718, %v719
  %v855 = vmax.f32 %v722, %v723
  %v856 = vmax.f32 %v726, %v727
  %v857 = vmax.f32 %v730, %v731
  %v858 = vmax.f32 %v734, %v735
  %v859 = vmax.f32 %v738, %v739
  %v860 = vmax.f32 %v742, %v743
  %v861 = vmax.f32 %v746, %v747
  %v862 = vmax.f32 %v750, %v751
  %v863 = vmax.f32 %v754, %v755
  %v864 = vmax.f32 %v758, %v759
  %v865 = vmax.f32 %v762, %v763
  %v866 = vmax.f32 %v766, %v767
  %v867 = vmax.f32 %v770, %v771
  %v868 = vmax.f32 %v774, %v775
  %v869 = vmax.f32 %v778, %v779
  %v870 = vmax.f32 %v782, %v783
  %v871 = vmax.f32 %v786, %v787
  %v872 = vmax.f32 %v790, %v791
  %v873 = vmax.f32 %v794, %v795
  %v874 = vmax.f32 %v798, %v799
  %v875 = vmax.f32 %v802, %v803
  %v876 = vmax.f32 %v806, %v807
  %v877 = vmax.f32 %v810, %v811
  %v878 = vmax.f32 %v814, %v815
  %v879 = vmax.f32 %v818, %v819
  %v880 = vmax.f32 %v820, %v850
  %v881 = vmax.f32 %v821, %v851
  %v882 = vmax.f32 %v822, %v852
  %v883 = vmax.f32 %v823, %v853
  %v884 = vmax.f32 %v824, %v854
  %v885 = vmax.f32 %v825, %v855
  %v886 = vmax.f32 %v826, %v856
  %v887 = vmax.f32 %v827, %v857
  %v888 = vmax.f32 %v828, %v858
  %v889 = vmax.f32 %v829, %v859
  %v890 = vmax.f32 %v830, %v860
  %v891 = vmax.f32 %v831, %v861
  %v892 = vmax.f32 %v832, %v862
  %v893 = vmax.f32 %v833, %v863
  %v894 = vmax.f32 %v834, %v864
  %v895 = vmax.f32 %v835, %v865
  %v896 = vmax.f32 %v836, %v866
  %v897 = vmax.f32 %v837, %v867
  %v898 = vmax.f32 %v838, %v868
  %v899 = vmax.f32 %v839, %v869
  %v900 = vmax.f32 %v840, %v870
  %v901 = vmax.f32 %v841, %v871
  %v902 = vmax.f32 %v842, %v872
  %v903 = vmax.f32 %v843, %v873
  %v904 = vmax.f32 %v844, %v874
  %v905 = vmax.f32 %v845, %v875
  %v906 = vmax.f32 %v846, %v876
  %v907 = vmax.f32 %v847, %v877
  %v908 = vmax.f32 %v848, %v878
  %v909 = vmax.f32 %v849, %v879
  %v910 = vld [vmem:[%s1] sm:$0xf]
  %v911 = vld [vmem:[%s1 + $0x4] sm:$0xf]
  %v912 = vld [vmem:[%s1 + $0x8] sm:$0xf]
  %v913 = vld [vmem:[%s1 + $0xc] sm:$0xf]
  %v914 = vld [vmem:[%s1 + $0x10] sm:$0xf]
  %v915 = vld [vmem:[%s1 + $0x14] sm:$0xf]
  %v916 = vld [vmem:[%s1 + $0x18] sm:$0xf]
  %v917 = vld [vmem:[%s1 + $0x1c] sm:$0xf]
  %v918 = vld [vmem:[%s3] sm:$0xf]
  %v919 = vld [vmem:[%s3 + $0x4] sm:$0xf]
  %v920 = vld [vmem:[%s3 + $0x8] sm:$0xf]
  %v921 = vld [vmem:[%s3 + $0xc] sm:$0xf]
  %v922 = vld [vmem:[%s3 + $0x10] sm:$0xf]
  %v923 = vld [vmem:[%s3 + $0x14] sm:$0xf]
  %v924 = vld [vmem:[%s3 + $0x18] sm:$0xf]
  %v925 = vld [vmem:[%s3 + $0x1c] sm:$0xf]
  %v926 = vld [vmem:[%s3 + $0x20] sm:$0xf]
  %v927 = vld [vmem:[%s3 + $0x24] sm:$0xf]
  %v928 = vld [vmem:[%s3 + $0x28] sm:$0xf]
  %v929 = vld [vmem:[%s3 + $0x2c] sm:$0xf]
  %v930 = vld [vmem:[%s3 + $0x30] sm:$0xf]
  %v931 = vld [vmem:[%s3 + $0x34] sm:$0xf]
  %v940 = vunpack.c.l.b16 %v910
  %v941 = vunpack.c.l.b16 %v911
  %v942 = vunpack.c.l.b16 %v912
  %v943 = vunpack.c.l.b16 %v913
  %v944 = vunpack.c.l.b16 %v914
  %v945 = vunpack.c.l.b16 %v915
  %v946 = vunpack.c.l.b16 %v916
  %v947 = vunpack.c.l.b16 %v917
  %v948 = vpack.c.b16 %v941, %v940
  %v949 = vpack.c.b16 %v943, %v942
  %v950 = vpack.c.b16 %v945, %v944
  %v951 = vpack.c.b16 %v947, %v946
  %v966 = vunpack.c.l.b16 %v918
  %v967 = vunpack.c.l.b16 %v919
  %v968 = vunpack.c.l.b16 %v920
  %v969 = vunpack.c.l.b16 %v921
  %v970 = vunpack.c.l.b16 %v922
  %v971 = vunpack.c.l.b16 %v923
  %v972 = vunpack.c.l.b16 %v924
  %v973 = vunpack.c.l.b16 %v925
  %v974 = vunpack.c.l.b16 %v926
  %v975 = vunpack.c.l.b16 %v927
  %v976 = vunpack.c.l.b16 %v928
  %v977 = vunpack.c.l.b16 %v929
  %v978 = vunpack.c.l.b16 %v930
  %v979 = vunpack.c.l.b16 %v931
  %v980 = vpack.c.b16 %v967, %v966
  %v981 = vpack.c.b16 %v969, %v968
  %v982 = vpack.c.b16 %v971, %v970
  %v983 = vpack.c.b16 %v973, %v972
  %v984 = vpack.c.b16 %v975, %v974
  %v985 = vpack.c.b16 %v977, %v976
  %v986 = vpack.c.b16 %v979, %v978
  %vm994 = vcmask 916480
  %v996 = vsel %vm994, %v948, 0
  %v999 = vsel %vm994, %v949, 0
  %v1002 = vsel %vm994, %v950, 0
  %v1005 = vsel %vm994, %v951, 0
  %1007 = vmatpush.bf16.msra.mxu0 0
  %1008 = vmatpush.bf16.msra.mxu0 %v986
  %1009 = vmatpush.bf16.msra.mxu0 %v985
  %1010 = vmatpush.bf16.msra.mxu0 %v984
  %1011 = vmatpush.bf16.msra.mxu0 %v983
  %1012 = vmatpush.bf16.msra.mxu0 %v982
  %1013 = vmatpush.bf16.msra.mxu0 %v981
  %1014 = vmatpush.bf16.msra.mxu0 %v980
  %1015 = vmatmul.bf16.gmra.mxu0 %v996
  %v1016 = vpop.f32.mrf.mxu0
  %v1017 = vadd.f32 0.0, %v1016
  %v1018 = vpop.f32.mrf.mxu0
  %v1019 = vadd.f32 0.0, %v1018
  %1020 = vmatmul.bf16.gmra.mxu0 %v999
  %v1021 = vpop.f32.mrf.mxu0
  %v1022 = vadd.f32 0.0, %v1021
  %v1023 = vpop.f32.mrf.mxu0
  %v1024 = vadd.f32 0.0, %v1023
  %1025 = vmatmul.bf16.gmra.mxu0 %v1002
  %v1026 = vpop.f32.mrf.mxu0
  %v1027 = vadd.f32 0.0, %v1026
  %v1028 = vpop.f32.mrf.mxu0
  %v1029 = vadd.f32 0.0, %v1028
  %1030 = vmatmul.bf16.gmra.mxu0 %v1005
  %v1031 = vpop.f32.mrf.mxu0
  %v1032 = vadd.f32 0.0, %v1031
  %v1033 = vpop.f32.mrf.mxu0
  %v1034 = vadd.f32 0.0, %v1033
  %1035 = vdwg.mxu0
  %v1036 = vld [vmem:[%s5 + $0x2] ss:$0 sm:$0xff]
  %v1037 = vmul.f32 %v1017, %v1036
  %v1038 = vmul.f32 %v1019, %v1036
  %v1039 = vmul.f32 %v1022, %v1036
  %v1040 = vmul.f32 %v1024, %v1036
  %v1041 = vmul.f32 %v1027, %v1036
  %v1042 = vmul.f32 %v1029, %v1036
  %v1043 = vmul.f32 %v1032, %v1036
  %v1044 = vmul.f32 %v1034, %v1036
  %v1045 = vld [vmem:[%s5 + $0x3] ss:$0 sm:$0xff]
  %v1046 = vadd.f32 %v1037, %v1045
  %v1047 = vadd.f32 %v1038, %v1045
  %v1048 = vadd.f32 %v1039, %v1045
  %v1049 = vadd.f32 %v1040, %v1045
  %v1050 = vadd.f32 %v1041, %v1045
  %v1051 = vadd.f32 %v1042, %v1045
  %v1052 = vadd.f32 %v1043, %v1045
  %v1053 = vadd.f32 %v1044, %v1045
  %v1054 = vmax.f32 %v1046, %v1048
  %v1055 = vmax.f32 %v1047, %v1049
  %v1056 = vmax.f32 %v1050, %v1052
  %v1057 = vmax.f32 %v1051, %v1053
  %v1058 = vmax.f32 %v1054, %v1056
  %v1059 = vmax.f32 %v1055, %v1057
  %v1060 = vpack.c.bf16 %v880, %v880
  %v1061 = vpack.c.bf16 %v881, %v881
  %v1062 = vpack.c.bf16 %v882, %v882
  %v1063 = vpack.c.bf16 %v883, %v883
  %v1064 = vpack.c.bf16 %v884, %v884
  %v1065 = vpack.c.bf16 %v885, %v885
  %v1066 = vpack.c.bf16 %v886, %v886
  %v1067 = vpack.c.bf16 %v887, %v887
  %v1068 = vpack.c.bf16 %v888, %v888
  %v1069 = vpack.c.bf16 %v889, %v889
  %v1070 = vpack.c.bf16 %v890, %v890
  %v1071 = vpack.c.bf16 %v891, %v891
  %v1072 = vpack.c.bf16 %v892, %v892
  %v1073 = vpack.c.bf16 %v893, %v893
  %v1074 = vpack.c.bf16 %v894, %v894
  %v1075 = vpack.c.bf16 %v895, %v895
  %v1076 = vpack.c.bf16 %v896, %v896
  %v1077 = vpack.c.bf16 %v897, %v897
  %v1078 = vpack.c.bf16 %v898, %v898
  %v1079 = vpack.c.bf16 %v899, %v899
  %v1080 = vpack.c.bf16 %v900, %v900
  %v1081 = vpack.c.bf16 %v901, %v901
  %v1082 = vpack.c.bf16 %v902, %v902
  %v1083 = vpack.c.bf16 %v903, %v903
  %v1084 = vpack.c.bf16 %v904, %v904
  %v1085 = vpack.c.bf16 %v905, %v905
  %v1086 = vpack.c.bf16 %v906, %v906
  %v1087 = vpack.c.bf16 %v907, %v907
  %v1088 = vpack.c.bf16 %v908, %v908
  %v1089 = vpack.c.bf16 %v909, %v909
  %v1090 = vpack.c.bf16 %v1059, %v1058
  %v1091 = vld [vmem:[%s4] sm:$0xf]
  %v1092 = vld [vmem:[%s4 + $0x4] sm:$0xf]
  %v1093 = vld [vmem:[%s4 + $0x8] sm:$0xf]
  %v1094 = vld [vmem:[%s4 + $0xc] sm:$0xf]
  %v1095 = vld [vmem:[%s4 + $0x10] sm:$0xf]
  %v1096 = vld [vmem:[%s4 + $0x14] sm:$0xf]
  %v1097 = vld [vmem:[%s4 + $0x18] sm:$0xf]
  %v1098 = vld [vmem:[%s4 + $0x1c] sm:$0xf]
  %v1099 = vld [vmem:[%s4 + $0x20] sm:$0xf]
  %v1100 = vld [vmem:[%s4 + $0x24] sm:$0xf]
  %v1101 = vld [vmem:[%s4 + $0x28] sm:$0xf]
  %v1102 = vld [vmem:[%s4 + $0x2c] sm:$0xf]
  %v1103 = vld [vmem:[%s4 + $0x30] sm:$0xf]
  %v1104 = vld [vmem:[%s4 + $0x34] sm:$0xf]
  %v1105 = vld [vmem:[%s4 + $0x38] sm:$0xf]
  %v1106 = vld [vmem:[%s4 + $0x3c] sm:$0xf]
  %s1107 = scalar_lea.vmem %s4, 64
  %v1108 = vld [vmem:[%s1107] sm:$0xf]
  %v1109 = vld [vmem:[%s1107 + $0x4] sm:$0xf]
  %v1110 = vld [vmem:[%s1107 + $0x8] sm:$0xf]
  %v1111 = vld [vmem:[%s1107 + $0xc] sm:$0xf]
  %v1112 = vld [vmem:[%s1107 + $0x10] sm:$0xf]
  %v1113 = vld [vmem:[%s1107 + $0x14] sm:$0xf]
  %v1114 = vld [vmem:[%s1107 + $0x18] sm:$0xf]
  %v1115 = vld [vmem:[%s1107 + $0x1c] sm:$0xf]
  %v1116 = vld [vmem:[%s1107 + $0x20] sm:$0xf]
  %v1117 = vld [vmem:[%s1107 + $0x24] sm:$0xf]
  %v1118 = vld [vmem:[%s1107 + $0x28] sm:$0xf]
  %v1119 = vld [vmem:[%s1107 + $0x2c] sm:$0xf]
  %v1120 = vld [vmem:[%s1107 + $0x30] sm:$0xf]
  %v1121 = vld [vmem:[%s1107 + $0x34] sm:$0xf]
  %v1122 = vld [vmem:[%s1107 + $0x38] sm:$0xf]
  %v1123 = vld [vmem:[%s1107 + $0x3c] sm:$0xf]
  %v1126 = vunpack.c.l.b16 %v1062
  %v1127 = vunpack.c.l.b16 %v1063
  %v1128 = vpack.c.b16 %v1127, %v1126
  %v1146 = vunpack.c.l.b16 %v1108
  %v1147 = vunpack.c.l.b16 %v1109
  %v1148 = vunpack.c.l.b16 %v1110
  %v1149 = vunpack.c.l.b16 %v1111
  %v1150 = vunpack.c.l.b16 %v1112
  %v1151 = vunpack.c.l.b16 %v1113
  %v1152 = vunpack.c.l.b16 %v1114
  %v1153 = vunpack.c.l.b16 %v1115
  %v1154 = vunpack.c.l.b16 %v1116
  %v1155 = vunpack.c.l.b16 %v1117
  %v1156 = vunpack.c.l.b16 %v1118
  %v1157 = vunpack.c.l.b16 %v1119
  %v1158 = vunpack.c.l.b16 %v1120
  %v1159 = vunpack.c.l.b16 %v1121
  %v1160 = vunpack.c.l.b16 %v1122
  %v1161 = vunpack.c.l.b16 %v1123
  %v1162 = vpack.c.b16 %v1147, %v1146
  %v1163 = vpack.c.b16 %v1149, %v1148
  %v1164 = vpack.c.b16 %v1151, %v1150
  %v1165 = vpack.c.b16 %v1153, %v1152
  %v1166 = vpack.c.b16 %v1155, %v1154
  %v1167 = vpack.c.b16 %v1157, %v1156
  %v1168 = vpack.c.b16 %v1159, %v1158
  %v1169 = vpack.c.b16 %v1161, %v1160
  %1178 = vmatpush.bf16.msra.mxu0 %v1169
  %1179 = vmatpush.bf16.msra.mxu0 %v1168
  %1180 = vmatpush.bf16.msra.mxu0 %v1167
  %1181 = vmatpush.bf16.msra.mxu0 %v1166
  %1182 = vmatpush.bf16.msra.mxu0 %v1165
  %1183 = vmatpush.bf16.msra.mxu0 %v1164
  %1184 = vmatpush.bf16.msra.mxu0 %v1163
  %1185 = vmatpush.bf16.msra.mxu0 %v1162
  %1186 = vmatmul.bf16.gmra.mxu0 %v1128
  %v1187 = vpop.f32.mrf.mxu0
  %v1188 = vadd.f32 0.0, %v1187
  %v1189 = vpop.f32.mrf.mxu0
  %v1190 = vadd.f32 0.0, %v1189
  %1191 = vdwg.mxu0
  %s1192 = scalar_lea.vmem %s4, 128
  %v1193 = vld [vmem:[%s1192] sm:$0xf]
  %v1194 = vld [vmem:[%s1192 + $0x4] sm:$0xf]
  %v1195 = vld [vmem:[%s1192 + $0x8] sm:$0xf]
  %v1196 = vld [vmem:[%s1192 + $0xc] sm:$0xf]
  %v1197 = vld [vmem:[%s1192 + $0x10] sm:$0xf]
  %v1198 = vld [vmem:[%s1192 + $0x14] sm:$0xf]
  %v1199 = vld [vmem:[%s1192 + $0x18] sm:$0xf]
  %v1200 = vld [vmem:[%s1192 + $0x1c] sm:$0xf]
  %v1201 = vld [vmem:[%s1192 + $0x20] sm:$0xf]
  %v1202 = vld [vmem:[%s1192 + $0x24] sm:$0xf]
  %v1203 = vld [vmem:[%s1192 + $0x28] sm:$0xf]
  %v1204 = vld [vmem:[%s1192 + $0x2c] sm:$0xf]
  %v1205 = vld [vmem:[%s1192 + $0x30] sm:$0xf]
  %v1206 = vld [vmem:[%s1192 + $0x34] sm:$0xf]
  %v1207 = vld [vmem:[%s1192 + $0x38] sm:$0xf]
  %v1208 = vld [vmem:[%s1192 + $0x3c] sm:$0xf]
  %s1209 = scalar_lea.vmem %s4, 192
  %v1210 = vld [vmem:[%s1209] sm:$0xf]
  %v1211 = vld [vmem:[%s1209 + $0x4] sm:$0xf]
  %v1212 = vld [vmem:[%s1209 + $0x8] sm:$0xf]
  %v1213 = vld [vmem:[%s1209 + $0xc] sm:$0xf]
  %v1214 = vld [vmem:[%s1209 + $0x10] sm:$0xf]
  %v1215 = vld [vmem:[%s1209 + $0x14] sm:$0xf]
  %v1216 = vld [vmem:[%s1209 + $0x18] sm:$0xf]
  %v1217 = vld [vmem:[%s1209 + $0x1c] sm:$0xf]
  %v1218 = vld [vmem:[%s1209 + $0x20] sm:$0xf]
  %v1219 = vld [vmem:[%s1209 + $0x24] sm:$0xf]
  %v1220 = vld [vmem:[%s1209 + $0x28] sm:$0xf]
  %v1221 = vld [vmem:[%s1209 + $0x2c] sm:$0xf]
  %v1222 = vld [vmem:[%s1209 + $0x30] sm:$0xf]
  %v1223 = vld [vmem:[%s1209 + $0x34] sm:$0xf]
  %v1224 = vld [vmem:[%s1209 + $0x38] sm:$0xf]
  %v1225 = vld [vmem:[%s1209 + $0x3c] sm:$0xf]
  %v1228 = vunpack.c.l.b16 %v1066
  %v1229 = vunpack.c.l.b16 %v1067
  %v1230 = vpack.c.b16 %v1229, %v1228
  %v1248 = vunpack.c.l.b16 %v1210
  %v1249 = vunpack.c.l.b16 %v1211
  %v1250 = vunpack.c.l.b16 %v1212
  %v1251 = vunpack.c.l.b16 %v1213
  %v1252 = vunpack.c.l.b16 %v1214
  %v1253 = vunpack.c.l.b16 %v1215
  %v1254 = vunpack.c.l.b16 %v1216
  %v1255 = vunpack.c.l.b16 %v1217
  %v1256 = vunpack.c.l.b16 %v1218
  %v1257 = vunpack.c.l.b16 %v1219
  %v1258 = vunpack.c.l.b16 %v1220
  %v1259 = vunpack.c.l.b16 %v1221
  %v1260 = vunpack.c.l.b16 %v1222
  %v1261 = vunpack.c.l.b16 %v1223
  %v1262 = vunpack.c.l.b16 %v1224
  %v1263 = vunpack.c.l.b16 %v1225
  %v1264 = vpack.c.b16 %v1249, %v1248
  %v1265 = vpack.c.b16 %v1251, %v1250
  %v1266 = vpack.c.b16 %v1253, %v1252
  %v1267 = vpack.c.b16 %v1255, %v1254
  %v1268 = vpack.c.b16 %v1257, %v1256
  %v1269 = vpack.c.b16 %v1259, %v1258
  %v1270 = vpack.c.b16 %v1261, %v1260
  %v1271 = vpack.c.b16 %v1263, %v1262
  %1280 = vmatpush.bf16.msra.mxu0 %v1271
  %1281 = vmatpush.bf16.msra.mxu0 %v1270
  %1282 = vmatpush.bf16.msra.mxu0 %v1269
  %1283 = vmatpush.bf16.msra.mxu0 %v1268
  %1284 = vmatpush.bf16.msra.mxu0 %v1267
  %1285 = vmatpush.bf16.msra.mxu0 %v1266
  %1286 = vmatpush.bf16.msra.mxu0 %v1265
  %1287 = vmatpush.bf16.msra.mxu0 %v1264
  %1288 = vmatmul.bf16.gmra.mxu0 %v1230
  %v1289 = vpop.f32.mrf.mxu0
  %v1290 = vadd.f32 0.0, %v1289
  %v1291 = vpop.f32.mrf.mxu0
  %v1292 = vadd.f32 0.0, %v1291
  %1293 = vdwg.mxu0
  %s1294 = scalar_lea.vmem %s4, 256
  %v1295 = vld [vmem:[%s1294] sm:$0xf]
  %v1296 = vld [vmem:[%s1294 + $0x4] sm:$0xf]
  %v1297 = vld [vmem:[%s1294 + $0x8] sm:$0xf]
  %v1298 = vld [vmem:[%s1294 + $0xc] sm:$0xf]
  %v1299 = vld [vmem:[%s1294 + $0x10] sm:$0xf]
  %v1300 = vld [vmem:[%s1294 + $0x14] sm:$0xf]
  %v1301 = vld [vmem:[%s1294 + $0x18] sm:$0xf]
  %v1302 = vld [vmem:[%s1294 + $0x1c] sm:$0xf]
  %v1303 = vld [vmem:[%s1294 + $0x20] sm:$0xf]
  %v1304 = vld [vmem:[%s1294 + $0x24] sm:$0xf]
  %v1305 = vld [vmem:[%s1294 + $0x28] sm:$0xf]
  %v1306 = vld [vmem:[%s1294 + $0x2c] sm:$0xf]
  %v1307 = vld [vmem:[%s1294 + $0x30] sm:$0xf]
  %v1308 = vld [vmem:[%s1294 + $0x34] sm:$0xf]
  %v1309 = vld [vmem:[%s1294 + $0x38] sm:$0xf]
  %v1310 = vld [vmem:[%s1294 + $0x3c] sm:$0xf]
  %s1311 = scalar_lea.vmem %s4, 320
  %v1312 = vld [vmem:[%s1311] sm:$0xf]
  %v1313 = vld [vmem:[%s1311 + $0x4] sm:$0xf]
  %v1314 = vld [vmem:[%s1311 + $0x8] sm:$0xf]
  %v1315 = vld [vmem:[%s1311 + $0xc] sm:$0xf]
  %v1316 = vld [vmem:[%s1311 + $0x10] sm:$0xf]
  %v1317 = vld [vmem:[%s1311 + $0x14] sm:$0xf]
  %v1318 = vld [vmem:[%s1311 + $0x18] sm:$0xf]
  %v1319 = vld [vmem:[%s1311 + $0x1c] sm:$0xf]
  %v1320 = vld [vmem:[%s1311 + $0x20] sm:$0xf]
  %v1321 = vld [vmem:[%s1311 + $0x24] sm:$0xf]
  %v1322 = vld [vmem:[%s1311 + $0x28] sm:$0xf]
  %v1323 = vld [vmem:[%s1311 + $0x2c] sm:$0xf]
  %v1324 = vld [vmem:[%s1311 + $0x30] sm:$0xf]
  %v1325 = vld [vmem:[%s1311 + $0x34] sm:$0xf]
  %v1326 = vld [vmem:[%s1311 + $0x38] sm:$0xf]
  %v1327 = vld [vmem:[%s1311 + $0x3c] sm:$0xf]
  %v1330 = vunpack.c.l.b16 %v1070
  %v1331 = vunpack.c.l.b16 %v1071
  %v1332 = vpack.c.b16 %v1331, %v1330
  %v1350 = vunpack.c.l.b16 %v1312
  %v1351 = vunpack.c.l.b16 %v1313
  %v1352 = vunpack.c.l.b16 %v1314
  %v1353 = vunpack.c.l.b16 %v1315
  %v1354 = vunpack.c.l.b16 %v1316
  %v1355 = vunpack.c.l.b16 %v1317
  %v1356 = vunpack.c.l.b16 %v1318
  %v1357 = vunpack.c.l.b16 %v1319
  %v1358 = vunpack.c.l.b16 %v1320
  %v1359 = vunpack.c.l.b16 %v1321
  %v1360 = vunpack.c.l.b16 %v1322
  %v1361 = vunpack.c.l.b16 %v1323
  %v1362 = vunpack.c.l.b16 %v1324
  %v1363 = vunpack.c.l.b16 %v1325
  %v1364 = vunpack.c.l.b16 %v1326
  %v1365 = vunpack.c.l.b16 %v1327
  %v1366 = vpack.c.b16 %v1351, %v1350
  %v1367 = vpack.c.b16 %v1353, %v1352
  %v1368 = vpack.c.b16 %v1355, %v1354
  %v1369 = vpack.c.b16 %v1357, %v1356
  %v1370 = vpack.c.b16 %v1359, %v1358
  %v1371 = vpack.c.b16 %v1361, %v1360
  %v1372 = vpack.c.b16 %v1363, %v1362
  %v1373 = vpack.c.b16 %v1365, %v1364
  %1382 = vmatpush.bf16.msra.mxu0 %v1373
  %1383 = vmatpush.bf16.msra.mxu0 %v1372
  %1384 = vmatpush.bf16.msra.mxu0 %v1371
  %1385 = vmatpush.bf16.msra.mxu0 %v1370
  %1386 = vmatpush.bf16.msra.mxu0 %v1369
  %1387 = vmatpush.bf16.msra.mxu0 %v1368
  %1388 = vmatpush.bf16.msra.mxu0 %v1367
  %1389 = vmatpush.bf16.msra.mxu0 %v1366
  %1390 = vmatmul.bf16.gmra.mxu0 %v1332
  %v1391 = vpop.f32.mrf.mxu0
  %v1392 = vadd.f32 0.0, %v1391
  %v1393 = vpop.f32.mrf.mxu0
  %v1394 = vadd.f32 0.0, %v1393
  %1395 = vdwg.mxu0
  %s1396 = scalar_lea.vmem %s4, 384
  %v1397 = vld [vmem:[%s1396] sm:$0xf]
  %v1398 = vld [vmem:[%s1396 + $0x4] sm:$0xf]
  %v1399 = vld [vmem:[%s1396 + $0x8] sm:$0xf]
  %v1400 = vld [vmem:[%s1396 + $0xc] sm:$0xf]
  %v1401 = vld [vmem:[%s1396 + $0x10] sm:$0xf]
  %v1402 = vld [vmem:[%s1396 + $0x14] sm:$0xf]
  %v1403 = vld [vmem:[%s1396 + $0x18] sm:$0xf]
  %v1404 = vld [vmem:[%s1396 + $0x1c] sm:$0xf]
  %v1405 = vld [vmem:[%s1396 + $0x20] sm:$0xf]
  %v1406 = vld [vmem:[%s1396 + $0x24] sm:$0xf]
  %v1407 = vld [vmem:[%s1396 + $0x28] sm:$0xf]
  %v1408 = vld [vmem:[%s1396 + $0x2c] sm:$0xf]
  %v1409 = vld [vmem:[%s1396 + $0x30] sm:$0xf]
  %v1410 = vld [vmem:[%s1396 + $0x34] sm:$0xf]
  %v1411 = vld [vmem:[%s1396 + $0x38] sm:$0xf]
  %v1412 = vld [vmem:[%s1396 + $0x3c] sm:$0xf]
  %s1413 = scalar_lea.vmem %s4, 448
  %v1414 = vld [vmem:[%s1413] sm:$0xf]
  %v1415 = vld [vmem:[%s1413 + $0x4] sm:$0xf]
  %v1416 = vld [vmem:[%s1413 + $0x8] sm:$0xf]
  %v1417 = vld [vmem:[%s1413 + $0xc] sm:$0xf]
  %v1418 = vld [vmem:[%s1413 + $0x10] sm:$0xf]
  %v1419 = vld [vmem:[%s1413 + $0x14] sm:$0xf]
  %v1420 = vld [vmem:[%s1413 + $0x18] sm:$0xf]
  %v1421 = vld [vmem:[%s1413 + $0x1c] sm:$0xf]
  %v1422 = vld [vmem:[%s1413 + $0x20] sm:$0xf]
  %v1423 = vld [vmem:[%s1413 + $0x24] sm:$0xf]
  %v1424 = vld [vmem:[%s1413 + $0x28] sm:$0xf]
  %v1425 = vld [vmem:[%s1413 + $0x2c] sm:$0xf]
  %v1426 = vld [vmem:[%s1413 + $0x30] sm:$0xf]
  %v1427 = vld [vmem:[%s1413 + $0x34] sm:$0xf]
  %v1428 = vld [vmem:[%s1413 + $0x38] sm:$0xf]
  %v1429 = vld [vmem:[%s1413 + $0x3c] sm:$0xf]
  %v1432 = vunpack.c.l.b16 %v1074
  %v1433 = vunpack.c.l.b16 %v1075
  %v1434 = vpack.c.b16 %v1433, %v1432
  %v1452 = vunpack.c.l.b16 %v1414
  %v1453 = vunpack.c.l.b16 %v1415
  %v1454 = vunpack.c.l.b16 %v1416
  %v1455 = vunpack.c.l.b16 %v1417
  %v1456 = vunpack.c.l.b16 %v1418
  %v1457 = vunpack.c.l.b16 %v1419
  %v1458 = vunpack.c.l.b16 %v1420
  %v1459 = vunpack.c.l.b16 %v1421
  %v1460 = vunpack.c.l.b16 %v1422
  %v1461 = vunpack.c.l.b16 %v1423
  %v1462 = vunpack.c.l.b16 %v1424
  %v1463 = vunpack.c.l.b16 %v1425
  %v1464 = vunpack.c.l.b16 %v1426
  %v1465 = vunpack.c.l.b16 %v1427
  %v1466 = vunpack.c.l.b16 %v1428
  %v1467 = vunpack.c.l.b16 %v1429
  %v1468 = vpack.c.b16 %v1453, %v1452
  %v1469 = vpack.c.b16 %v1455, %v1454
  %v1470 = vpack.c.b16 %v1457, %v1456
  %v1471 = vpack.c.b16 %v1459, %v1458
  %v1472 = vpack.c.b16 %v1461, %v1460
  %v1473 = vpack.c.b16 %v1463, %v1462
  %v1474 = vpack.c.b16 %v1465, %v1464
  %v1475 = vpack.c.b16 %v1467, %v1466
  %1484 = vmatpush.bf16.msra.mxu0 %v1475
  %1485 = vmatpush.bf16.msra.mxu0 %v1474
  %1486 = vmatpush.bf16.msra.mxu0 %v1473
  %1487 = vmatpush.bf16.msra.mxu0 %v1472
  %1488 = vmatpush.bf16.msra.mxu0 %v1471
  %1489 = vmatpush.bf16.msra.mxu0 %v1470
  %1490 = vmatpush.bf16.msra.mxu0 %v1469
  %1491 = vmatpush.bf16.msra.mxu0 %v1468
  %1492 = vmatmul.bf16.gmra.mxu0 %v1434
  %v1493 = vpop.f32.mrf.mxu0
  %v1494 = vadd.f32 0.0, %v1493
  %v1495 = vpop.f32.mrf.mxu0
  %v1496 = vadd.f32 0.0, %v1495
  %1497 = vdwg.mxu0
  %s1498 = scalar_lea.vmem %s4, 512
  %v1499 = vld [vmem:[%s1498] sm:$0xf]
  %v1500 = vld [vmem:[%s1498 + $0x4] sm:$0xf]
  %v1501 = vld [vmem:[%s1498 + $0x8] sm:$0xf]
  %v1502 = vld [vmem:[%s1498 + $0xc] sm:$0xf]
  %v1503 = vld [vmem:[%s1498 + $0x10] sm:$0xf]
  %v1504 = vld [vmem:[%s1498 + $0x14] sm:$0xf]
  %v1505 = vld [vmem:[%s1498 + $0x18] sm:$0xf]
  %v1506 = vld [vmem:[%s1498 + $0x1c] sm:$0xf]
  %v1507 = vld [vmem:[%s1498 + $0x20] sm:$0xf]
  %v1508 = vld [vmem:[%s1498 + $0x24] sm:$0xf]
  %v1509 = vld [vmem:[%s1498 + $0x28] sm:$0xf]
  %v1510 = vld [vmem:[%s1498 + $0x2c] sm:$0xf]
  %v1511 = vld [vmem:[%s1498 + $0x30] sm:$0xf]
  %v1512 = vld [vmem:[%s1498 + $0x34] sm:$0xf]
  %v1513 = vld [vmem:[%s1498 + $0x38] sm:$0xf]
  %v1514 = vld [vmem:[%s1498 + $0x3c] sm:$0xf]
  %s1515 = scalar_lea.vmem %s4, 576
  %v1516 = vld [vmem:[%s1515] sm:$0xf]
  %v1517 = vld [vmem:[%s1515 + $0x4] sm:$0xf]
  %v1518 = vld [vmem:[%s1515 + $0x8] sm:$0xf]
  %v1519 = vld [vmem:[%s1515 + $0xc] sm:$0xf]
  %v1520 = vld [vmem:[%s1515 + $0x10] sm:$0xf]
  %v1521 = vld [vmem:[%s1515 + $0x14] sm:$0xf]
  %v1522 = vld [vmem:[%s1515 + $0x18] sm:$0xf]
  %v1523 = vld [vmem:[%s1515 + $0x1c] sm:$0xf]
  %v1524 = vld [vmem:[%s1515 + $0x20] sm:$0xf]
  %v1525 = vld [vmem:[%s1515 + $0x24] sm:$0xf]
  %v1526 = vld [vmem:[%s1515 + $0x28] sm:$0xf]
  %v1527 = vld [vmem:[%s1515 + $0x2c] sm:$0xf]
  %v1528 = vld [vmem:[%s1515 + $0x30] sm:$0xf]
  %v1529 = vld [vmem:[%s1515 + $0x34] sm:$0xf]
  %v1530 = vld [vmem:[%s1515 + $0x38] sm:$0xf]
  %v1531 = vld [vmem:[%s1515 + $0x3c] sm:$0xf]
  %v1534 = vunpack.c.l.b16 %v1078
  %v1535 = vunpack.c.l.b16 %v1079
  %v1536 = vpack.c.b16 %v1535, %v1534
  %v1554 = vunpack.c.l.b16 %v1516
  %v1555 = vunpack.c.l.b16 %v1517
  %v1556 = vunpack.c.l.b16 %v1518
  %v1557 = vunpack.c.l.b16 %v1519
  %v1558 = vunpack.c.l.b16 %v1520
  %v1559 = vunpack.c.l.b16 %v1521
  %v1560 = vunpack.c.l.b16 %v1522
  %v1561 = vunpack.c.l.b16 %v1523
  %v1562 = vunpack.c.l.b16 %v1524
  %v1563 = vunpack.c.l.b16 %v1525
  %v1564 = vunpack.c.l.b16 %v1526
  %v1565 = vunpack.c.l.b16 %v1527
  %v1566 = vunpack.c.l.b16 %v1528
  %v1567 = vunpack.c.l.b16 %v1529
  %v1568 = vunpack.c.l.b16 %v1530
  %v1569 = vunpack.c.l.b16 %v1531
  %v1570 = vpack.c.b16 %v1555, %v1554
  %v1571 = vpack.c.b16 %v1557, %v1556
  %v1572 = vpack.c.b16 %v1559, %v1558
  %v1573 = vpack.c.b16 %v1561, %v1560
  %v1574 = vpack.c.b16 %v1563, %v1562
  %v1575 = vpack.c.b16 %v1565, %v1564
  %v1576 = vpack.c.b16 %v1567, %v1566
  %v1577 = vpack.c.b16 %v1569, %v1568
  %1586 = vmatpush.bf16.msra.mxu0 %v1577
  %1587 = vmatpush.bf16.msra.mxu0 %v1576
  %1588 = vmatpush.bf16.msra.mxu0 %v1575
  %1589 = vmatpush.bf16.msra.mxu0 %v1574
  %1590 = vmatpush.bf16.msra.mxu0 %v1573
  %1591 = vmatpush.bf16.msra.mxu0 %v1572
  %1592 = vmatpush.bf16.msra.mxu0 %v1571
  %1593 = vmatpush.bf16.msra.mxu0 %v1570
  %1594 = vmatmul.bf16.gmra.mxu0 %v1536
  %v1595 = vpop.f32.mrf.mxu0
  %v1596 = vadd.f32 0.0, %v1595
  %v1597 = vpop.f32.mrf.mxu0
  %v1598 = vadd.f32 0.0, %v1597
  %1599 = vdwg.mxu0
  %s1600 = scalar_lea.vmem %s4, 640
  %v1601 = vld [vmem:[%s1600] sm:$0xf]
  %v1602 = vld [vmem:[%s1600 + $0x4] sm:$0xf]
  %v1603 = vld [vmem:[%s1600 + $0x8] sm:$0xf]
  %v1604 = vld [vmem:[%s1600 + $0xc] sm:$0xf]
  %v1605 = vld [vmem:[%s1600 + $0x10] sm:$0xf]
  %v1606 = vld [vmem:[%s1600 + $0x14] sm:$0xf]
  %v1607 = vld [vmem:[%s1600 + $0x18] sm:$0xf]
  %v1608 = vld [vmem:[%s1600 + $0x1c] sm:$0xf]
  %v1609 = vld [vmem:[%s1600 + $0x20] sm:$0xf]
  %v1610 = vld [vmem:[%s1600 + $0x24] sm:$0xf]
  %v1611 = vld [vmem:[%s1600 + $0x28] sm:$0xf]
  %v1612 = vld [vmem:[%s1600 + $0x2c] sm:$0xf]
  %v1613 = vld [vmem:[%s1600 + $0x30] sm:$0xf]
  %v1614 = vld [vmem:[%s1600 + $0x34] sm:$0xf]
  %v1615 = vld [vmem:[%s1600 + $0x38] sm:$0xf]
  %v1616 = vld [vmem:[%s1600 + $0x3c] sm:$0xf]
  %s1617 = scalar_lea.vmem %s4, 704
  %v1618 = vld [vmem:[%s1617] sm:$0xf]
  %v1619 = vld [vmem:[%s1617 + $0x4] sm:$0xf]
  %v1620 = vld [vmem:[%s1617 + $0x8] sm:$0xf]
  %v1621 = vld [vmem:[%s1617 + $0xc] sm:$0xf]
  %v1622 = vld [vmem:[%s1617 + $0x10] sm:$0xf]
  %v1623 = vld [vmem:[%s1617 + $0x14] sm:$0xf]
  %v1624 = vld [vmem:[%s1617 + $0x18] sm:$0xf]
  %v1625 = vld [vmem:[%s1617 + $0x1c] sm:$0xf]
  %v1626 = vld [vmem:[%s1617 + $0x20] sm:$0xf]
  %v1627 = vld [vmem:[%s1617 + $0x24] sm:$0xf]
  %v1628 = vld [vmem:[%s1617 + $0x28] sm:$0xf]
  %v1629 = vld [vmem:[%s1617 + $0x2c] sm:$0xf]
  %v1630 = vld [vmem:[%s1617 + $0x30] sm:$0xf]
  %v1631 = vld [vmem:[%s1617 + $0x34] sm:$0xf]
  %v1632 = vld [vmem:[%s1617 + $0x38] sm:$0xf]
  %v1633 = vld [vmem:[%s1617 + $0x3c] sm:$0xf]
  %v1636 = vunpack.c.l.b16 %v1082
  %v1637 = vunpack.c.l.b16 %v1083
  %v1638 = vpack.c.b16 %v1637, %v1636
  %v1656 = vunpack.c.l.b16 %v1618
  %v1657 = vunpack.c.l.b16 %v1619
  %v1658 = vunpack.c.l.b16 %v1620
  %v1659 = vunpack.c.l.b16 %v1621
  %v1660 = vunpack.c.l.b16 %v1622
  %v1661 = vunpack.c.l.b16 %v1623
  %v1662 = vunpack.c.l.b16 %v1624
  %v1663 = vunpack.c.l.b16 %v1625
  %v1664 = vunpack.c.l.b16 %v1626
  %v1665 = vunpack.c.l.b16 %v1627
  %v1666 = vunpack.c.l.b16 %v1628
  %v1667 = vunpack.c.l.b16 %v1629
  %v1668 = vunpack.c.l.b16 %v1630
  %v1669 = vunpack.c.l.b16 %v1631
  %v1670 = vunpack.c.l.b16 %v1632
  %v1671 = vunpack.c.l.b16 %v1633
  %v1672 = vpack.c.b16 %v1657, %v1656
  %v1673 = vpack.c.b16 %v1659, %v1658
  %v1674 = vpack.c.b16 %v1661, %v1660
  %v1675 = vpack.c.b16 %v1663, %v1662
  %v1676 = vpack.c.b16 %v1665, %v1664
  %v1677 = vpack.c.b16 %v1667, %v1666
  %v1678 = vpack.c.b16 %v1669, %v1668
  %v1679 = vpack.c.b16 %v1671, %v1670
  %1688 = vmatpush.bf16.msra.mxu0 %v1679
  %1689 = vmatpush.bf16.msra.mxu0 %v1678
  %1690 = vmatpush.bf16.msra.mxu0 %v1677
  %1691 = vmatpush.bf16.msra.mxu0 %v1676
  %1692 = vmatpush.bf16.msra.mxu0 %v1675
  %1693 = vmatpush.bf16.msra.mxu0 %v1674
  %1694 = vmatpush.bf16.msra.mxu0 %v1673
  %1695 = vmatpush.bf16.msra.mxu0 %v1672
  %1696 = vmatmul.bf16.gmra.mxu0 %v1638
  %v1697 = vpop.f32.mrf.mxu0
  %v1698 = vadd.f32 0.0, %v1697
  %v1699 = vpop.f32.mrf.mxu0
  %v1700 = vadd.f32 0.0, %v1699
  %1701 = vdwg.mxu0
  %s1702 = scalar_lea.vmem %s4, 768
  %v1703 = vld [vmem:[%s1702] sm:$0xf]
  %v1704 = vld [vmem:[%s1702 + $0x4] sm:$0xf]
  %v1705 = vld [vmem:[%s1702 + $0x8] sm:$0xf]
  %v1706 = vld [vmem:[%s1702 + $0xc] sm:$0xf]
  %v1707 = vld [vmem:[%s1702 + $0x10] sm:$0xf]
  %v1708 = vld [vmem:[%s1702 + $0x14] sm:$0xf]
  %v1709 = vld [vmem:[%s1702 + $0x18] sm:$0xf]
  %v1710 = vld [vmem:[%s1702 + $0x1c] sm:$0xf]
  %v1711 = vld [vmem:[%s1702 + $0x20] sm:$0xf]
  %v1712 = vld [vmem:[%s1702 + $0x24] sm:$0xf]
  %v1713 = vld [vmem:[%s1702 + $0x28] sm:$0xf]
  %v1714 = vld [vmem:[%s1702 + $0x2c] sm:$0xf]
  %v1715 = vld [vmem:[%s1702 + $0x30] sm:$0xf]
  %v1716 = vld [vmem:[%s1702 + $0x34] sm:$0xf]
  %v1717 = vld [vmem:[%s1702 + $0x38] sm:$0xf]
  %v1718 = vld [vmem:[%s1702 + $0x3c] sm:$0xf]
  %s1719 = scalar_lea.vmem %s4, 832
  %v1720 = vld [vmem:[%s1719] sm:$0xf]
  %v1721 = vld [vmem:[%s1719 + $0x4] sm:$0xf]
  %v1722 = vld [vmem:[%s1719 + $0x8] sm:$0xf]
  %v1723 = vld [vmem:[%s1719 + $0xc] sm:$0xf]
  %v1724 = vld [vmem:[%s1719 + $0x10] sm:$0xf]
  %v1725 = vld [vmem:[%s1719 + $0x14] sm:$0xf]
  %v1726 = vld [vmem:[%s1719 + $0x18] sm:$0xf]
  %v1727 = vld [vmem:[%s1719 + $0x1c] sm:$0xf]
  %v1728 = vld [vmem:[%s1719 + $0x20] sm:$0xf]
  %v1729 = vld [vmem:[%s1719 + $0x24] sm:$0xf]
  %v1730 = vld [vmem:[%s1719 + $0x28] sm:$0xf]
  %v1731 = vld [vmem:[%s1719 + $0x2c] sm:$0xf]
  %v1732 = vld [vmem:[%s1719 + $0x30] sm:$0xf]
  %v1733 = vld [vmem:[%s1719 + $0x34] sm:$0xf]
  %v1734 = vld [vmem:[%s1719 + $0x38] sm:$0xf]
  %v1735 = vld [vmem:[%s1719 + $0x3c] sm:$0xf]
  %v1738 = vunpack.c.l.b16 %v1086
  %v1739 = vunpack.c.l.b16 %v1087
  %v1740 = vpack.c.b16 %v1739, %v1738
  %v1758 = vunpack.c.l.b16 %v1720
  %v1759 = vunpack.c.l.b16 %v1721
  %v1760 = vunpack.c.l.b16 %v1722
  %v1761 = vunpack.c.l.b16 %v1723
  %v1762 = vunpack.c.l.b16 %v1724
  %v1763 = vunpack.c.l.b16 %v1725
  %v1764 = vunpack.c.l.b16 %v1726
  %v1765 = vunpack.c.l.b16 %v1727
  %v1766 = vunpack.c.l.b16 %v1728
  %v1767 = vunpack.c.l.b16 %v1729
  %v1768 = vunpack.c.l.b16 %v1730
  %v1769 = vunpack.c.l.b16 %v1731
  %v1770 = vunpack.c.l.b16 %v1732
  %v1771 = vunpack.c.l.b16 %v1733
  %v1772 = vunpack.c.l.b16 %v1734
  %v1773 = vunpack.c.l.b16 %v1735
  %v1774 = vpack.c.b16 %v1759, %v1758
  %v1775 = vpack.c.b16 %v1761, %v1760
  %v1776 = vpack.c.b16 %v1763, %v1762
  %v1777 = vpack.c.b16 %v1765, %v1764
  %v1778 = vpack.c.b16 %v1767, %v1766
  %v1779 = vpack.c.b16 %v1769, %v1768
  %v1780 = vpack.c.b16 %v1771, %v1770
  %v1781 = vpack.c.b16 %v1773, %v1772
  %1790 = vmatpush.bf16.msra.mxu0 %v1781
  %1791 = vmatpush.bf16.msra.mxu0 %v1780
  %1792 = vmatpush.bf16.msra.mxu0 %v1779
  %1793 = vmatpush.bf16.msra.mxu0 %v1778
  %1794 = vmatpush.bf16.msra.mxu0 %v1777
  %1795 = vmatpush.bf16.msra.mxu0 %v1776
  %1796 = vmatpush.bf16.msra.mxu0 %v1775
  %1797 = vmatpush.bf16.msra.mxu0 %v1774
  %1798 = vmatmul.bf16.gmra.mxu0 %v1740
  %v1799 = vpop.f32.mrf.mxu0
  %v1800 = vadd.f32 0.0, %v1799
  %v1801 = vpop.f32.mrf.mxu0
  %v1802 = vadd.f32 0.0, %v1801
  %1803 = vdwg.mxu0
  %s1804 = scalar_lea.vmem %s4, 896
  %v1805 = vld [vmem:[%s1804] sm:$0xf]
  %v1806 = vld [vmem:[%s1804 + $0x4] sm:$0xf]
  %v1807 = vld [vmem:[%s1804 + $0x8] sm:$0xf]
  %v1808 = vld [vmem:[%s1804 + $0xc] sm:$0xf]
  %v1809 = vld [vmem:[%s1804 + $0x10] sm:$0xf]
  %v1810 = vld [vmem:[%s1804 + $0x14] sm:$0xf]
  %v1811 = vld [vmem:[%s1804 + $0x18] sm:$0xf]
  %v1812 = vld [vmem:[%s1804 + $0x1c] sm:$0xf]
  %v1813 = vld [vmem:[%s1804 + $0x20] sm:$0xf]
  %v1814 = vld [vmem:[%s1804 + $0x24] sm:$0xf]
  %v1815 = vld [vmem:[%s1804 + $0x28] sm:$0xf]
  %v1816 = vld [vmem:[%s1804 + $0x2c] sm:$0xf]
  %v1817 = vld [vmem:[%s1804 + $0x30] sm:$0xf]
  %v1818 = vld [vmem:[%s1804 + $0x34] sm:$0xf]
  %v1819 = vld [vmem:[%s1804 + $0x38] sm:$0xf]
  %v1820 = vld [vmem:[%s1804 + $0x3c] sm:$0xf]
  %s1821 = scalar_lea.vmem %s4, 960
  %v1822 = vld [vmem:[%s1821] sm:$0xf]
  %v1823 = vld [vmem:[%s1821 + $0x4] sm:$0xf]
  %v1824 = vld [vmem:[%s1821 + $0x8] sm:$0xf]
  %v1825 = vld [vmem:[%s1821 + $0xc] sm:$0xf]
  %v1826 = vld [vmem:[%s1821 + $0x10] sm:$0xf]
  %v1827 = vld [vmem:[%s1821 + $0x14] sm:$0xf]
  %v1828 = vld [vmem:[%s1821 + $0x18] sm:$0xf]
  %v1829 = vld [vmem:[%s1821 + $0x1c] sm:$0xf]
  %v1830 = vld [vmem:[%s1821 + $0x20] sm:$0xf]
  %v1831 = vld [vmem:[%s1821 + $0x24] sm:$0xf]
  %v1832 = vld [vmem:[%s1821 + $0x28] sm:$0xf]
  %v1833 = vld [vmem:[%s1821 + $0x2c] sm:$0xf]
  %v1834 = vld [vmem:[%s1821 + $0x30] sm:$0xf]
  %v1835 = vld [vmem:[%s1821 + $0x34] sm:$0xf]
  %v1836 = vld [vmem:[%s1821 + $0x38] sm:$0xf]
  %v1837 = vld [vmem:[%s1821 + $0x3c] sm:$0xf]
  %v1854 = vunpack.c.l.b16 %v1822
  %v1855 = vunpack.c.l.b16 %v1823
  %v1856 = vunpack.c.l.b16 %v1824
  %v1857 = vunpack.c.l.b16 %v1825
  %v1858 = vunpack.c.l.b16 %v1826
  %v1859 = vunpack.c.l.b16 %v1827
  %v1860 = vunpack.c.l.b16 %v1828
  %v1861 = vunpack.c.l.b16 %v1829
  %v1862 = vunpack.c.l.b16 %v1830
  %v1863 = vunpack.c.l.b16 %v1831
  %v1864 = vunpack.c.l.b16 %v1832
  %v1865 = vunpack.c.l.b16 %v1833
  %v1866 = vunpack.c.l.b16 %v1834
  %v1867 = vunpack.c.l.b16 %v1835
  %v1868 = vunpack.c.l.b16 %v1836
  %v1869 = vunpack.c.l.b16 %v1837
  %v1870 = vpack.c.b16 %v1855, %v1854
  %v1871 = vpack.c.b16 %v1857, %v1856
  %v1872 = vpack.c.b16 %v1859, %v1858
  %v1873 = vpack.c.b16 %v1861, %v1860
  %v1874 = vpack.c.b16 %v1863, %v1862
  %v1875 = vpack.c.b16 %v1865, %v1864
  %v1876 = vpack.c.b16 %v1867, %v1866
  %v1877 = vpack.c.b16 %v1869, %v1868
  %1886 = vmatpush.bf16.msra.mxu0 %v1877
  %1887 = vmatpush.bf16.msra.mxu0 %v1876
  %1888 = vmatpush.bf16.msra.mxu0 %v1875
  %1889 = vmatpush.bf16.msra.mxu0 %v1874
  %1890 = vmatpush.bf16.msra.mxu0 %v1873
  %1891 = vmatpush.bf16.msra.mxu0 %v1872
  %1892 = vmatpush.bf16.msra.mxu0 %v1871
  %1893 = vmatpush.bf16.msra.mxu0 %v1870
  %1894 = vmatmul.bf16.gmra.mxu0 %v1090
  %v1895 = vpop.f32.mrf.mxu0
  %v1896 = vadd.f32 0.0, %v1895
  %v1897 = vpop.f32.mrf.mxu0
  %v1898 = vadd.f32 0.0, %v1897
  %1899 = vdwg.mxu0
  %v1902 = vunpack.c.l.b16 %v1060
  %v1903 = vunpack.c.l.b16 %v1061
  %v1904 = vpack.c.b16 %v1903, %v1902
  %v1922 = vunpack.c.l.b16 %v1091
  %v1923 = vunpack.c.l.b16 %v1092
  %v1924 = vunpack.c.l.b16 %v1093
  %v1925 = vunpack.c.l.b16 %v1094
  %v1926 = vunpack.c.l.b16 %v1095
  %v1927 = vunpack.c.l.b16 %v1096
  %v1928 = vunpack.c.l.b16 %v1097
  %v1929 = vunpack.c.l.b16 %v1098
  %v1930 = vunpack.c.l.b16 %v1099
  %v1931 = vunpack.c.l.b16 %v1100
  %v1932 = vunpack.c.l.b16 %v1101
  %v1933 = vunpack.c.l.b16 %v1102
  %v1934 = vunpack.c.l.b16 %v1103
  %v1935 = vunpack.c.l.b16 %v1104
  %v1936 = vunpack.c.l.b16 %v1105
  %v1937 = vunpack.c.l.b16 %v1106
  %v1938 = vpack.c.b16 %v1923, %v1922
  %v1939 = vpack.c.b16 %v1925, %v1924
  %v1940 = vpack.c.b16 %v1927, %v1926
  %v1941 = vpack.c.b16 %v1929, %v1928
  %v1942 = vpack.c.b16 %v1931, %v1930
  %v1943 = vpack.c.b16 %v1933, %v1932
  %v1944 = vpack.c.b16 %v1935, %v1934
  %v1945 = vpack.c.b16 %v1937, %v1936
  %1954 = vmatpush.bf16.msra.mxu0 %v1945
  %1955 = vmatpush.bf16.msra.mxu0 %v1944
  %1956 = vmatpush.bf16.msra.mxu0 %v1943
  %1957 = vmatpush.bf16.msra.mxu0 %v1942
  %1958 = vmatpush.bf16.msra.mxu0 %v1941
  %1959 = vmatpush.bf16.msra.mxu0 %v1940
  %1960 = vmatpush.bf16.msra.mxu0 %v1939
  %1961 = vmatpush.bf16.msra.mxu0 %v1938
  %1962 = vmatmul.bf16.gmra.mxu0 %v1904
  %v1963 = vpop.f32.mrf.mxu0
  %v1964 = vadd.f32 %v1188, %v1963
  %v1965 = vpop.f32.mrf.mxu0
  %v1966 = vadd.f32 %v1190, %v1965
  %1967 = vdwg.mxu0
  %v1970 = vunpack.c.l.b16 %v1064
  %v1971 = vunpack.c.l.b16 %v1065
  %v1972 = vpack.c.b16 %v1971, %v1970
  %v1990 = vunpack.c.l.b16 %v1193
  %v1991 = vunpack.c.l.b16 %v1194
  %v1992 = vunpack.c.l.b16 %v1195
  %v1993 = vunpack.c.l.b16 %v1196
  %v1994 = vunpack.c.l.b16 %v1197
  %v1995 = vunpack.c.l.b16 %v1198
  %v1996 = vunpack.c.l.b16 %v1199
  %v1997 = vunpack.c.l.b16 %v1200
  %v1998 = vunpack.c.l.b16 %v1201
  %v1999 = vunpack.c.l.b16 %v1202
  %v2000 = vunpack.c.l.b16 %v1203
  %v2001 = vunpack.c.l.b16 %v1204
  %v2002 = vunpack.c.l.b16 %v1205
  %v2003 = vunpack.c.l.b16 %v1206
  %v2004 = vunpack.c.l.b16 %v1207
  %v2005 = vunpack.c.l.b16 %v1208
  %v2006 = vpack.c.b16 %v1991, %v1990
  %v2007 = vpack.c.b16 %v1993, %v1992
  %v2008 = vpack.c.b16 %v1995, %v1994
  %v2009 = vpack.c.b16 %v1997, %v1996
  %v2010 = vpack.c.b16 %v1999, %v1998
  %v2011 = vpack.c.b16 %v2001, %v2000
  %v2012 = vpack.c.b16 %v2003, %v2002
  %v2013 = vpack.c.b16 %v2005, %v2004
  %2022 = vmatpush.bf16.msra.mxu0 %v2013
  %2023 = vmatpush.bf16.msra.mxu0 %v2012
  %2024 = vmatpush.bf16.msra.mxu0 %v2011
  %2025 = vmatpush.bf16.msra.mxu0 %v2010
  %2026 = vmatpush.bf16.msra.mxu0 %v2009
  %2027 = vmatpush.bf16.msra.mxu0 %v2008
  %2028 = vmatpush.bf16.msra.mxu0 %v2007
  %2029 = vmatpush.bf16.msra.mxu0 %v2006
  %2030 = vmatmul.bf16.gmra.mxu0 %v1972
  %v2031 = vpop.f32.mrf.mxu0
  %v2032 = vadd.f32 %v1290, %v2031
  %v2033 = vpop.f32.mrf.mxu0
  %v2034 = vadd.f32 %v1292, %v2033
  %2035 = vdwg.mxu0
  %v2038 = vunpack.c.l.b16 %v1068
  %v2039 = vunpack.c.l.b16 %v1069
  %v2040 = vpack.c.b16 %v2039, %v2038
  %v2058 = vunpack.c.l.b16 %v1295
  %v2059 = vunpack.c.l.b16 %v1296
  %v2060 = vunpack.c.l.b16 %v1297
  %v2061 = vunpack.c.l.b16 %v1298
  %v2062 = vunpack.c.l.b16 %v1299
  %v2063 = vunpack.c.l.b16 %v1300
  %v2064 = vunpack.c.l.b16 %v1301
  %v2065 = vunpack.c.l.b16 %v1302
  %v2066 = vunpack.c.l.b16 %v1303
  %v2067 = vunpack.c.l.b16 %v1304
  %v2068 = vunpack.c.l.b16 %v1305
  %v2069 = vunpack.c.l.b16 %v1306
  %v2070 = vunpack.c.l.b16 %v1307
  %v2071 = vunpack.c.l.b16 %v1308
  %v2072 = vunpack.c.l.b16 %v1309
  %v2073 = vunpack.c.l.b16 %v1310
  %v2074 = vpack.c.b16 %v2059, %v2058
  %v2075 = vpack.c.b16 %v2061, %v2060
  %v2076 = vpack.c.b16 %v2063, %v2062
  %v2077 = vpack.c.b16 %v2065, %v2064
  %v2078 = vpack.c.b16 %v2067, %v2066
  %v2079 = vpack.c.b16 %v2069, %v2068
  %v2080 = vpack.c.b16 %v2071, %v2070
  %v2081 = vpack.c.b16 %v2073, %v2072
  %2090 = vmatpush.bf16.msra.mxu0 %v2081
  %2091 = vmatpush.bf16.msra.mxu0 %v2080
  %2092 = vmatpush.bf16.msra.mxu0 %v2079
  %2093 = vmatpush.bf16.msra.mxu0 %v2078
  %2094 = vmatpush.bf16.msra.mxu0 %v2077
  %2095 = vmatpush.bf16.msra.mxu0 %v2076
  %2096 = vmatpush.bf16.msra.mxu0 %v2075
  %2097 = vmatpush.bf16.msra.mxu0 %v2074
  %2098 = vmatmul.bf16.gmra.mxu0 %v2040
  %v2099 = vpop.f32.mrf.mxu0
  %v2100 = vadd.f32 %v1392, %v2099
  %v2101 = vpop.f32.mrf.mxu0
  %v2102 = vadd.f32 %v1394, %v2101
  %2103 = vdwg.mxu0
  %v2106 = vunpack.c.l.b16 %v1072
  %v2107 = vunpack.c.l.b16 %v1073
  %v2108 = vpack.c.b16 %v2107, %v2106
  %v2126 = vunpack.c.l.b16 %v1397
  %v2127 = vunpack.c.l.b16 %v1398
  %v2128 = vunpack.c.l.b16 %v1399
  %v2129 = vunpack.c.l.b16 %v1400
  %v2130 = vunpack.c.l.b16 %v1401
  %v2131 = vunpack.c.l.b16 %v1402
  %v2132 = vunpack.c.l.b16 %v1403
  %v2133 = vunpack.c.l.b16 %v1404
  %v2134 = vunpack.c.l.b16 %v1405
  %v2135 = vunpack.c.l.b16 %v1406
  %v2136 = vunpack.c.l.b16 %v1407
  %v2137 = vunpack.c.l.b16 %v1408
  %v2138 = vunpack.c.l.b16 %v1409
  %v2139 = vunpack.c.l.b16 %v1410
  %v2140 = vunpack.c.l.b16 %v1411
  %v2141 = vunpack.c.l.b16 %v1412
  %v2142 = vpack.c.b16 %v2127, %v2126
  %v2143 = vpack.c.b16 %v2129, %v2128
  %v2144 = vpack.c.b16 %v2131, %v2130
  %v2145 = vpack.c.b16 %v2133, %v2132
  %v2146 = vpack.c.b16 %v2135, %v2134
  %v2147 = vpack.c.b16 %v2137, %v2136
  %v2148 = vpack.c.b16 %v2139, %v2138
  %v2149 = vpack.c.b16 %v2141, %v2140
  %2158 = vmatpush.bf16.msra.mxu0 %v2149
  %2159 = vmatpush.bf16.msra.mxu0 %v2148
  %2160 = vmatpush.bf16.msra.mxu0 %v2147
  %2161 = vmatpush.bf16.msra.mxu0 %v2146
  %2162 = vmatpush.bf16.msra.mxu0 %v2145
  %2163 = vmatpush.bf16.msra.mxu0 %v2144
  %2164 = vmatpush.bf16.msra.mxu0 %v2143
  %2165 = vmatpush.bf16.msra.mxu0 %v2142
  %2166 = vmatmul.bf16.gmra.mxu0 %v2108
  %v2167 = vpop.f32.mrf.mxu0
  %v2168 = vadd.f32 %v1494, %v2167
  %v2169 = vpop.f32.mrf.mxu0
  %v2170 = vadd.f32 %v1496, %v2169
  %2171 = vdwg.mxu0
  %v2174 = vunpack.c.l.b16 %v1076
  %v2175 = vunpack.c.l.b16 %v1077
  %v2176 = vpack.c.b16 %v2175, %v2174
  %v2194 = vunpack.c.l.b16 %v1499
  %v2195 = vunpack.c.l.b16 %v1500
  %v2196 = vunpack.c.l.b16 %v1501
  %v2197 = vunpack.c.l.b16 %v1502
  %v2198 = vunpack.c.l.b16 %v1503
  %v2199 = vunpack.c.l.b16 %v1504
  %v2200 = vunpack.c.l.b16 %v1505
  %v2201 = vunpack.c.l.b16 %v1506
  %v2202 = vunpack.c.l.b16 %v1507
  %v2203 = vunpack.c.l.b16 %v1508
  %v2204 = vunpack.c.l.b16 %v1509
  %v2205 = vunpack.c.l.b16 %v1510
  %v2206 = vunpack.c.l.b16 %v1511
  %v2207 = vunpack.c.l.b16 %v1512
  %v2208 = vunpack.c.l.b16 %v1513
  %v2209 = vunpack.c.l.b16 %v1514
  %v2210 = vpack.c.b16 %v2195, %v2194
  %v2211 = vpack.c.b16 %v2197, %v2196
  %v2212 = vpack.c.b16 %v2199, %v2198
  %v2213 = vpack.c.b16 %v2201, %v2200
  %v2214 = vpack.c.b16 %v2203, %v2202
  %v2215 = vpack.c.b16 %v2205, %v2204
  %v2216 = vpack.c.b16 %v2207, %v2206
  %v2217 = vpack.c.b16 %v2209, %v2208
  %2226 = vmatpush.bf16.msra.mxu0 %v2217
  %2227 = vmatpush.bf16.msra.mxu0 %v2216
  %2228 = vmatpush.bf16.msra.mxu0 %v2215
  %2229 = vmatpush.bf16.msra.mxu0 %v2214
  %2230 = vmatpush.bf16.msra.mxu0 %v2213
  %2231 = vmatpush.bf16.msra.mxu0 %v2212
  %2232 = vmatpush.bf16.msra.mxu0 %v2211
  %2233 = vmatpush.bf16.msra.mxu0 %v2210
  %2234 = vmatmul.bf16.gmra.mxu0 %v2176
  %v2235 = vpop.f32.mrf.mxu0
  %v2236 = vadd.f32 %v1596, %v2235
  %v2237 = vpop.f32.mrf.mxu0
  %v2238 = vadd.f32 %v1598, %v2237
  %2239 = vdwg.mxu0
  %v2242 = vunpack.c.l.b16 %v1080
  %v2243 = vunpack.c.l.b16 %v1081
  %v2244 = vpack.c.b16 %v2243, %v2242
  %v2262 = vunpack.c.l.b16 %v1601
  %v2263 = vunpack.c.l.b16 %v1602
  %v2264 = vunpack.c.l.b16 %v1603
  %v2265 = vunpack.c.l.b16 %v1604
  %v2266 = vunpack.c.l.b16 %v1605
  %v2267 = vunpack.c.l.b16 %v1606
  %v2268 = vunpack.c.l.b16 %v1607
  %v2269 = vunpack.c.l.b16 %v1608
  %v2270 = vunpack.c.l.b16 %v1609
  %v2271 = vunpack.c.l.b16 %v1610
  %v2272 = vunpack.c.l.b16 %v1611
  %v2273 = vunpack.c.l.b16 %v1612
  %v2274 = vunpack.c.l.b16 %v1613
  %v2275 = vunpack.c.l.b16 %v1614
  %v2276 = vunpack.c.l.b16 %v1615
  %v2277 = vunpack.c.l.b16 %v1616
  %v2278 = vpack.c.b16 %v2263, %v2262
  %v2279 = vpack.c.b16 %v2265, %v2264
  %v2280 = vpack.c.b16 %v2267, %v2266
  %v2281 = vpack.c.b16 %v2269, %v2268
  %v2282 = vpack.c.b16 %v2271, %v2270
  %v2283 = vpack.c.b16 %v2273, %v2272
  %v2284 = vpack.c.b16 %v2275, %v2274
  %v2285 = vpack.c.b16 %v2277, %v2276
  %2294 = vmatpush.bf16.msra.mxu0 %v2285
  %2295 = vmatpush.bf16.msra.mxu0 %v2284
  %2296 = vmatpush.bf16.msra.mxu0 %v2283
  %2297 = vmatpush.bf16.msra.mxu0 %v2282
  %2298 = vmatpush.bf16.msra.mxu0 %v2281
  %2299 = vmatpush.bf16.msra.mxu0 %v2280
  %2300 = vmatpush.bf16.msra.mxu0 %v2279
  %2301 = vmatpush.bf16.msra.mxu0 %v2278
  %2302 = vmatmul.bf16.gmra.mxu0 %v2244
  %v2303 = vpop.f32.mrf.mxu0
  %v2304 = vadd.f32 %v1698, %v2303
  %v2305 = vpop.f32.mrf.mxu0
  %v2306 = vadd.f32 %v1700, %v2305
  %2307 = vdwg.mxu0
  %v2310 = vunpack.c.l.b16 %v1084
  %v2311 = vunpack.c.l.b16 %v1085
  %v2312 = vpack.c.b16 %v2311, %v2310
  %v2330 = vunpack.c.l.b16 %v1703
  %v2331 = vunpack.c.l.b16 %v1704
  %v2332 = vunpack.c.l.b16 %v1705
  %v2333 = vunpack.c.l.b16 %v1706
  %v2334 = vunpack.c.l.b16 %v1707
  %v2335 = vunpack.c.l.b16 %v1708
  %v2336 = vunpack.c.l.b16 %v1709
  %v2337 = vunpack.c.l.b16 %v1710
  %v2338 = vunpack.c.l.b16 %v1711
  %v2339 = vunpack.c.l.b16 %v1712
  %v2340 = vunpack.c.l.b16 %v1713
  %v2341 = vunpack.c.l.b16 %v1714
  %v2342 = vunpack.c.l.b16 %v1715
  %v2343 = vunpack.c.l.b16 %v1716
  %v2344 = vunpack.c.l.b16 %v1717
  %v2345 = vunpack.c.l.b16 %v1718
  %v2346 = vpack.c.b16 %v2331, %v2330
  %v2347 = vpack.c.b16 %v2333, %v2332
  %v2348 = vpack.c.b16 %v2335, %v2334
  %v2349 = vpack.c.b16 %v2337, %v2336
  %v2350 = vpack.c.b16 %v2339, %v2338
  %v2351 = vpack.c.b16 %v2341, %v2340
  %v2352 = vpack.c.b16 %v2343, %v2342
  %v2353 = vpack.c.b16 %v2345, %v2344
  %2362 = vmatpush.bf16.msra.mxu0 %v2353
  %2363 = vmatpush.bf16.msra.mxu0 %v2352
  %2364 = vmatpush.bf16.msra.mxu0 %v2351
  %2365 = vmatpush.bf16.msra.mxu0 %v2350
  %2366 = vmatpush.bf16.msra.mxu0 %v2349
  %2367 = vmatpush.bf16.msra.mxu0 %v2348
  %2368 = vmatpush.bf16.msra.mxu0 %v2347
  %2369 = vmatpush.bf16.msra.mxu0 %v2346
  %2370 = vmatmul.bf16.gmra.mxu0 %v2312
  %v2371 = vpop.f32.mrf.mxu0
  %v2372 = vadd.f32 %v1800, %v2371
  %v2373 = vpop.f32.mrf.mxu0
  %v2374 = vadd.f32 %v1802, %v2373
  %2375 = vdwg.mxu0
  %v2378 = vunpack.c.l.b16 %v1088
  %v2379 = vunpack.c.l.b16 %v1089
  %v2380 = vpack.c.b16 %v2379, %v2378
  %v2398 = vunpack.c.l.b16 %v1805
  %v2399 = vunpack.c.l.b16 %v1806
  %v2400 = vunpack.c.l.b16 %v1807
  %v2401 = vunpack.c.l.b16 %v1808
  %v2402 = vunpack.c.l.b16 %v1809
  %v2403 = vunpack.c.l.b16 %v1810
  %v2404 = vunpack.c.l.b16 %v1811
  %v2405 = vunpack.c.l.b16 %v1812
  %v2406 = vunpack.c.l.b16 %v1813
  %v2407 = vunpack.c.l.b16 %v1814
  %v2408 = vunpack.c.l.b16 %v1815
  %v2409 = vunpack.c.l.b16 %v1816
  %v2410 = vunpack.c.l.b16 %v1817
  %v2411 = vunpack.c.l.b16 %v1818
  %v2412 = vunpack.c.l.b16 %v1819
  %v2413 = vunpack.c.l.b16 %v1820
  %v2414 = vpack.c.b16 %v2399, %v2398
  %v2415 = vpack.c.b16 %v2401, %v2400
  %v2416 = vpack.c.b16 %v2403, %v2402
  %v2417 = vpack.c.b16 %v2405, %v2404
  %v2418 = vpack.c.b16 %v2407, %v2406
  %v2419 = vpack.c.b16 %v2409, %v2408
  %v2420 = vpack.c.b16 %v2411, %v2410
  %v2421 = vpack.c.b16 %v2413, %v2412
  %2430 = vmatpush.bf16.msra.mxu0 %v2421
  %2431 = vmatpush.bf16.msra.mxu0 %v2420
  %2432 = vmatpush.bf16.msra.mxu0 %v2419
  %2433 = vmatpush.bf16.msra.mxu0 %v2418
  %2434 = vmatpush.bf16.msra.mxu0 %v2417
  %2435 = vmatpush.bf16.msra.mxu0 %v2416
  %2436 = vmatpush.bf16.msra.mxu0 %v2415
  %2437 = vmatpush.bf16.msra.mxu0 %v2414
  %2438 = vmatmul.bf16.gmra.mxu0 %v2380
  %v2439 = vpop.f32.mrf.mxu0
  %v2440 = vadd.f32 %v1896, %v2439
  %v2441 = vpop.f32.mrf.mxu0
  %v2442 = vadd.f32 %v1898, %v2441
  %2443 = vdwg.mxu0
  %v2444 = vadd.f32 %v1964, %v2032
  %v2445 = vadd.f32 %v1966, %v2034
  %v2446 = vadd.f32 %v2100, %v2168
  %v2447 = vadd.f32 %v2102, %v2170
  %v2448 = vadd.f32 %v2236, %v2304
  %v2449 = vadd.f32 %v2238, %v2306
  %v2450 = vadd.f32 %v2372, %v2440
  %v2451 = vadd.f32 %v2374, %v2442
  %v2452 = vadd.f32 %v2444, %v2446
  %v2453 = vadd.f32 %v2445, %v2447
  %v2454 = vadd.f32 %v2448, %v2450
  %v2455 = vadd.f32 %v2449, %v2451
  %v2456 = vadd.f32 %v2452, %v2454
  %v2457 = vadd.f32 %v2453, %v2455
  %v2458 = vld [vmem:[%s5 + $0x4] ss:$0 sm:$0xff]
  %v2459 = vadd.f32 %v2456, %v2458
  %v2460 = vadd.f32 %v2457, %v2458
  %v2461 = vmax.f32 %v2459, 0.0
  %v2462 = vmax.f32 %v2460, 0.0
  %v2463 = vld [vmem:[%s5 + $0x5] ss:$0 sm:$0xff]
  %v2464 = vmul.f32 %v2461, %v2463
  %v2465 = vmul.f32 %v2462, %v2463
  %vm2466 = vcmask 523264
  %v2467 = vsel %vm2466, %v2464, 0.0
  %2468 = vadd.xlane.f32.xlu0 %v2467
  %v2469 = vpop.xlane.xlu0 %2468
  %v2470 = vsel %vm2466, %v2465, 0.0
  %2471 = vadd.xlane.f32.xlu0 %v2470
  %v2472 = vpop.xlane.xlu0 %2471
  %v2473 = vld [vmem:[%s5 + $0x6] ss:$0 sm:$0xff]
  %v2474 = vadd.f32 %v2469, %v2473
  %v2475 = vadd.f32 %v2472, %v2473
  %vm2476 = vcmask 7168
  %2477 = vst.msk [vmem:[%s6] sm:$0xff] %vm2476, %v2474
  %2478 = vst.msk [vmem:[%s6 + $0x8] sm:$0xff] %vm2476, %v2475
  // Predicated region
  $region26: #{deepnet_forward.1} parent=0 // pred_check
    _
  $region27: #{deepnet_forward.1} parent=0 // pred_check_branch
    %2480 = sbr.rel (0) target = $region29
  $region28: #{deepnet_forward.1} parent=0 // pred_region
    _
  $region29: #{deepnet_forward.1} parent=0 // pred_fallthru
    _
  // Predicated region
  $region30: #{deepnet_forward.1} parent=0 // pred_check
    _
  $region31: #{deepnet_forward.1} parent=0 // pred_check_branch
    %2482 = sbr.rel (0) target = $region33
  $region32: #{deepnet_forward.1} parent=0 // pred_region
    _
  $region33: #{deepnet_forward.1} parent=0 // pred_fallthru
    _

</llo_original>
